<compile_context>
chip_gen: v5e
topology: v5e:2x2
jax: 0.10.0
libtpu: 0.0.40
codegen_flags: <defaults>
</compile_context>

<pallas_src>
import functools
import math

import jax
import jax.numpy as jnp
import numpy as np
from jax.experimental import pallas as pl
from jax.experimental.pallas import tpu as pltpu


def user_encode_kernel(p_ref, r_ref, u_ref, wcat_ref, wsq_ref, vec_ref, out_ref,
                       *, hist_len, pack):
    # p_ref    : (TB*H, D)  bf16   item-history embeddings for TB nodes
    # r_ref    : (TB*H, D)  bf16   rating-history embeddings for TB nodes
    # u_ref    : (TB, D)    bf16   user embeddings for TB nodes
    # wcat_ref : (2, 2D, D) bf16   [w_1.weight.T ; att1.weight.T]
    # wsq_ref  : (2, D, D)  bf16   [w_2.weight.T ; att2.weight.T]
    # vec_ref  : (5, D)     f32    [w_1.bias; w_2.bias; att1.bias; att2.bias; att3.weight]
    # out_ref  : (TB//pack, pack*D) f32  -- `pack` nodes packed per 128-lane row
    tbh, d = p_ref.shape
    h = hist_len
    tb = tbh // h

    w1 = wcat_ref[0]                       # (2D, D)
    a1 = wcat_ref[1]                       # (2D, D)
    w1p, w1r = w1[:d], w1[d:]              # concat split of w_1
    a1o, a1u = a1[:d], a1[d:]              # concat split of att1
    w2 = wsq_ref[0]                        # (D, D)
    a2 = wsq_ref[1]                        # (D, D)
    b1 = vec_ref[0:1]                      # (1, D) f32
    b2 = vec_ref[1:2]
    ab1 = vec_ref[2:3]
    ab2 = vec_ref[3:4]
    a3r = vec_ref[4:5]                     # att3 weight as a (1, D) row

    p = p_ref[...]
    r = r_ref[...]
    u = u_ref[...]

    # x = relu(w_1([p | r])) -- the concat is folded into two K=D matmuls (same
    # flops, no concatenated slab ever written to / re-read from HBM).
    x = (jnp.dot(p, w1p, preferred_element_type=jnp.float32)
         + jnp.dot(r, w1r, preferred_element_type=jnp.float32) + b1)
    x = jnp.maximum(x, 0.0)

    # o = relu(w_2(x))
    o = jnp.dot(x.astype(jnp.bfloat16), w2, preferred_element_type=jnp.float32) + b2
    o = jnp.maximum(o, 0.0)                # (TB*H, D) f32
    o_bf = o.astype(jnp.bfloat16)          # single bf16 copy, reused below
    o3 = o.reshape(tb, h, d)               # single (tb, h, d) view, reused below

    # Attention MLP: relu(att1([o | u])) -> relu(att2(.)) -> att3(.)
    # u-term computed once per node (TB rows) and broadcast over the H neighbors.
    # (v5e note: if profiling shows the MXU slot binding, re-fuse [o | bcast(u)]
    #  into one K=2D matmul instead -- K=D=64 half-fills its 128-deep MXU.)
    ao = jnp.dot(o_bf, a1o, preferred_element_type=jnp.float32)     # (TB*H, D)
    au = jnp.dot(u, a1u, preferred_element_type=jnp.float32)        # (TB, D)
    a = jnp.maximum(ao.reshape(tb, h, d) + au[:, None, :] + ab1, 0.0)
    a = jnp.dot(a.reshape(tbh, d).astype(jnp.bfloat16), a2,
                preferred_element_type=jnp.float32) + ab2
    a = jnp.maximum(a, 0.0)

    # att3 produces a width-1 result -> VPU multiply + lane reduction (no MXU push).
    # att3's bias is uniform over neighbors; softmax is shift-invariant -> dropped.
    s = jnp.sum(a.reshape(tb, h, d) * a3r, axis=-1, keepdims=True)  # (TB, H, 1)

    # Softmax over the neighbor axis (per node), in f32; EUP reciprocal.
    s = s - jnp.max(s, axis=1, keepdims=True)
    e = jnp.exp(s)
    att_w = e * pl.reciprocal(jnp.sum(e, axis=1, keepdims=True), approx=True)

    # att_history[n] = sum_h att_w[n, h] * o[n, h]; `pack` nodes per output row so
    # the store is a full 128-lane (unmasked) vst when D < 128.
    weighted = jnp.sum(o3 * att_w, axis=1)                          # (TB, D) f32
    out_ref[...] = weighted.reshape(tb // pack, pack * d)


def pack_params(w1_w, w1_b, w2_w, w2_b, a1_w, a1_b, a2_w, a2_b, a3_w, a3_b,
                compute_dtype=jnp.bfloat16):
    """Pack PyTorch-layout weights into the 3 stacked kernel operands."""
    wcat = jnp.stack([w1_w.T, a1_w.T]).astype(compute_dtype)            # (2, 2D, D)
    wsq = jnp.stack([w2_w.T, a2_w.T]).astype(compute_dtype)             # (2, D, D)
    vecs = jnp.stack([w1_b, w2_b, a1_b, a2_b,
                      a3_w.reshape(-1)]).astype(jnp.float32)            # (5, D)
    # a3_b is intentionally dropped (softmax shift invariance).
    return wcat, wsq, vecs


def _pick_node_block(B, tb):
    """Largest usable node block <= tb dividing B (no jnp.pad of activations)."""
    # TODO(synk): handle a ragged tail with a masked final block instead of
    #             shrinking tb / collapsing to a single block for awkward B.
    tb = max(1, min(tb, B))
    if B % tb != 0:
        tb = math.gcd(tb, B)
    if tb % 8 != 0 and tb != B:
        tb = B   # keep the (8, 128) block rule for the output store without padding
    return tb


def _pick_lane_pack(B, tb, D):
    """Nodes packed per 128-lane output row (unmasked stores when D < 128)."""
    if D < 128 and 128 % D == 0:
        cand = 128 // D
        if tb % cand == 0 and B % cand == 0:
            rows = tb // cand
            if rows % 8 == 0 or rows == B // cand:   # respect the (8, 128) block rule
                return cand
    return 1


def _call_kernel(p2, r2, u, wcat, wsq, vecs, *, B, H, D, tb, nb, pack,
                 single_buffer_weights, cost, vmem_limit):
    kernel = functools.partial(user_encode_kernel, hist_len=H, pack=pack)

    def wspec(shape):
        index_map = lambda b: (0,) * len(shape)
        if single_buffer_weights:
            # Grid-invariant operands: one VMEM buffer is enough; double-buffering
            # them is pure footprint (matters most on v7x's 64 MiB at larger D).
            return pl.BlockSpec(shape, index_map,
                                pipeline_mode=pl.Buffered(buffer_count=1))
        return pl.BlockSpec(shape, index_map)

    out = pl.pallas_call(
        kernel,
        out_shape=jax.ShapeDtypeStruct((B // pack, pack * D), jnp.float32),
        grid_spec=pltpu.PrefetchScalarGridSpec(
            num_scalar_prefetch=0,
            grid=(nb,),
            in_specs=[
                pl.BlockSpec((tb * H, D), lambda b: (b, 0)),   # item-history slab
                pl.BlockSpec((tb * H, D), lambda b: (b, 0)),   # rating-history slab
                pl.BlockSpec((tb, D), lambda b: (b, 0)),       # user reps
                wspec(wcat.shape),                             # stacked 2D->D weights
                wspec(wsq.shape),                              # stacked D->D weights
                wspec(vecs.shape),                             # biases + att3 row
            ],
            out_specs=pl.BlockSpec((tb // pack, pack * D), lambda b: (b, 0)),
        ),
        compiler_params=pltpu.CompilerParams(
            dimension_semantics=("parallel",),
            vmem_limit_bytes=vmem_limit,
        ),
        cost_estimate=cost,
    )(p2, r2, u, wcat, wsq, vecs)
    out = jax.block_until_ready(out)
    return out.reshape(B, D)   # free contiguous unpack of `pack` nodes per row


def user_encode_forward(p_embed, r_embed, u_rep, packed_params, *, tb=64):
    """p_embed, r_embed: (B, H, D); u_rep: (B, D).  Returns (B, D) f32.

    tb = nodes per grid step.  Default 64 so at H=8 each step feeds the MXU
    M = tb*H = 512 rows (amortizes the ~0.35us/step pipeline overhead, bigger DMAs;
    target >= 256 rows on v5e).  Per-step live set ~= 2 pipeline buffers of the two
    (tb*H, D) bf16 inputs plus ~4-6 (tb*H, D) f32 intermediates; roughly halve tb
    for v7x's 64 MiB VMEM at larger D.  Keep nb = B/tb even (and >= 2) so v7x's two
    TensorCores both get work via dimension_semantics=("parallel",).
    """
    wcat, wsq, vecs = packed_params
    B, H, D = p_embed.shape

    tb = _pick_node_block(B, tb)
    nb = B // tb
    pack = _pick_lane_pack(B, tb, D)

    # Two lane-dense operands; no concatenated [p|r] slab is ever written to HBM.
    # (In production keep the embedding tables in bf16 so the gather emits bf16
    #  directly and these casts fuse away / are no-ops.)
    p2 = p_embed.reshape(B * H, D).astype(jnp.bfloat16)
    r2 = r_embed.reshape(B * H, D).astype(jnp.bfloat16)
    u = u_rep.astype(jnp.bfloat16)

    # Advisory cost so XLA schedules the surrounding gathers / consumers sensibly.
    flops = 10 * B * H * D * D + 2 * B * D * D
    bytes_accessed = (2 * B * H * D * 2) + (B * D * 2) + (B * D * 4) \
        + (int(wcat.size) + int(wsq.size)) * 2 + int(vecs.size) * 4
    cost = pl.CostEstimate(flops=flops, transcendentals=B * H + B,
                           bytes_accessed=bytes_accessed)

    # Scoped VMEM: per-step live set with headroom, capped so the same tile also
    # fits v7x's 64 MiB physical VMEM (v5e/v6e have 128 MiB).
    step_bytes = (
        2 * (2 * tb * H * D * 2 + tb * D * 2                     # p, r, u bf16 (2 bufs)
             + tb * D * 4)                                       # out f32 (2 bufs)
        + 2 * ((int(wcat.size) + int(wsq.size)) * 2 + int(vecs.size) * 4)  # weights
        + 6 * tb * H * D * 4)                                    # f32 intermediates
    vmem_limit = int(min(max(2 * step_bytes, 32 * 2**20), 48 * 2**20))

    common = dict(B=B, H=H, D=D, tb=tb, nb=nb, cost=cost, vmem_limit=vmem_limit)
    try:
        # Optimized path: lane-dense packed output + single-buffered weights.
        return _call_kernel(p2, r2, u, wcat, wsq, vecs, pack=pack,
                            single_buffer_weights=True, **common)
    except Exception:
        # Fallback for Pallas versions without pl.Buffered(1) / minor-dim reshape
        # support: masked D-lane stores + default double-buffered weights.
        return _call_kernel(p2, r2, u, wcat, wsq, vecs, pack=1,
                            single_buffer_weights=False, **common)


def reference_forward(p_embed, r_embed, u_rep, torch_params, cast=lambda t: t):
    """Pure-JAX reference mirroring the PyTorch forward (eval mode).

    `cast` lets the reference mimic the kernel's bf16 MXU operands.
    """
    (w1_w, w1_b, w2_w, w2_b, a1_w, a1_b, a2_w, a2_b, a3_w, a3_b) = torch_params
    H = p_embed.shape[1]
    outs = []
    for b in range(p_embed.shape[0]):
        p, r, u = p_embed[b], r_embed[b], u_rep[b][None, :]
        x = jnp.concatenate([p, r], axis=1)
        x = jax.nn.relu(cast(x) @ cast(w1_w.T) + w1_b)
        o = jax.nn.relu(cast(x) @ cast(w2_w.T) + w2_b)
        u_exp = jnp.tile(u, (H, 1))
        a = jnp.concatenate([o, u_exp], axis=1)
        a = jax.nn.relu(cast(a) @ cast(a1_w.T) + a1_b)
        a = jax.nn.relu(cast(a) @ cast(a2_w.T) + a2_b)
        s = cast(a) @ cast(a3_w.T) + a3_b
        w = jax.nn.softmax(s, axis=0)        # (H, 1)
        outs.append(jnp.sum(w * o, axis=0))
    return jnp.stack(outs, axis=0)


if __name__ == "__main__":
    # Small, self-consistent shapes.
    D = 64            # embed_dim
    H = 8             # fixed history length per node
    B = 32            # nodes in the batch
    TB = 16           # nodes per grid step -> grid = (2,), even (both v7x TCs busy)
    NUM_USERS, NUM_ITEMS, NUM_RATINGS = 20, 40, 6

    key = jax.random.PRNGKey(0)
    ks = jax.random.split(key, 10)

    # Embedding tables (u2e, i2e, r2e)
    u2e = jax.random.normal(ks[0], (NUM_USERS, D), jnp.float32) * 0.1
    i2e = jax.random.normal(ks[1], (NUM_ITEMS, D), jnp.float32) * 0.1
    r2e = jax.random.normal(ks[2], (NUM_RATINGS, D), jnp.float32) * 0.1

    # Node batch + fixed-length history tables
    nodes = jnp.arange(B, dtype=jnp.int32) % NUM_USERS
    up_history = jax.random.randint(ks[3], (B, H), 0, NUM_ITEMS, dtype=jnp.int32)
    ur_history = jax.random.randint(ks[4], (B, H), 0, NUM_RATINGS, dtype=jnp.int32)

    def linear_params(k, in_dim, out_dim):
        kw, kb = jax.random.split(k)
        bound = 1.0 / np.sqrt(in_dim)
        w = jax.random.uniform(kw, (out_dim, in_dim), jnp.float32, -bound, bound)
        b = jax.random.uniform(kb, (out_dim,), jnp.float32, -bound, bound)
        return w, b

    # UserEncode linears
    w1_w, w1_b = linear_params(ks[5], 2 * D, D)   # w_1 : 2D -> D
    w2_w, w2_b = linear_params(ks[6], D, D)       # w_2 : D  -> D
    # Attention linears
    a1_w, a1_b = linear_params(ks[7], 2 * D, D)   # att1: 2D -> D
    a2_w, a2_b = linear_params(ks[8], D, D)       # att2: D  -> D
    a3_w, a3_b = linear_params(ks[9], D, 1)       # att3: D  -> 1

    torch_params = (w1_w, w1_b, w2_w, w2_b, a1_w, a1_b, a2_w, a2_b, a3_w, a3_b)
    packed = pack_params(*torch_params)

    # Glue: per-node embedding gathers (u2e.weight[i], i2e.weight[j], r2e.weight[k]).
    u_rep = u2e[nodes]               # (B, D)
    p_embed = i2e[up_history]        # (B, H, D)
    r_embed = r2e[ur_history]        # (B, H, D)

    out = user_encode_forward(p_embed, r_embed, u_rep, packed, tb=TB)
    out = jax.block_until_ready(out)

    # Reference mimics the kernel's bf16 MXU operands (f32 accumulation / softmax);
    # tolerance covers bf16 re-rounding of intermediates + the EUP approx reciprocal.
    bf16_round = lambda t: t.astype(jnp.bfloat16).astype(jnp.float32)
    ref = reference_forward(p_embed, r_embed, u_rep, torch_params, cast=bf16_round)
    np.testing.assert_allclose(np.asarray(out), np.asarray(ref), rtol=2e-2, atol=2e-3)

    print("KERNEL_OK")
</pallas_src>

<mosaic_0001>
module attributes {stable_mosaic.version = 11 : i64} {
  func.func @user_encode_kernel(%arg0: i32, %arg1: memref<128x64xbf16, #tpu.memory_space<vmem>>, %arg2: memref<128x64xbf16, #tpu.memory_space<vmem>>, %arg3: memref<16x64xbf16, #tpu.memory_space<vmem>>, %arg4: memref<2x128x64xbf16, #tpu.memory_space<vmem>>, %arg5: memref<2x64x64xbf16, #tpu.memory_space<vmem>>, %arg6: memref<5x64xf32, #tpu.memory_space<vmem>>, %arg7: memref<8x128xf32, #tpu.memory_space<vmem>>) attributes {dimension_semantics = [#tpu.dimension_semantics<parallel>], iteration_bounds = array<i64: 2>, scalar_prefetch = 0 : i64, scratch_operands = 0 : i64, tpu.core_type = #tpu.core_type<tc>, window_params = [{transform_indices = @transform_0, window_bounds = array<i64: 128, 64>}, {transform_indices = @transform_1, window_bounds = array<i64: 128, 64>}, {transform_indices = @transform_2, window_bounds = array<i64: 16, 64>}, {pipeline_mode = #tpu.pipeline_mode<synchronous>, transform_indices = @transform_3, window_bounds = array<i64: 2, 128, 64>}, {pipeline_mode = #tpu.pipeline_mode<synchronous>, transform_indices = @transform_4, window_bounds = array<i64: 2, 64, 64>}, {pipeline_mode = #tpu.pipeline_mode<synchronous>, transform_indices = @transform_5, window_bounds = array<i64: 5, 64>}, {transform_indices = @transform_6, window_bounds = array<i64: 8, 128>}]} {
    %c0 = arith.constant 0 : index
    %c0_0 = arith.constant 0 : index
    %c0_1 = arith.constant 0 : index
    %0 = vector.load %arg4[%c0, %c0_0, %c0_1] : memref<2x128x64xbf16, #tpu.memory_space<vmem>>, vector<1x128x64xbf16>
    %1 = vector.shape_cast %0 : vector<1x128x64xbf16> to vector<128x64xbf16>
    %c1 = arith.constant 1 : index
    %c0_2 = arith.constant 0 : index
    %c0_3 = arith.constant 0 : index
    %2 = vector.load %arg4[%c1, %c0_2, %c0_3] : memref<2x128x64xbf16, #tpu.memory_space<vmem>>, vector<1x128x64xbf16>
    %3 = vector.shape_cast %2 : vector<1x128x64xbf16> to vector<128x64xbf16>
    %4 = vector.extract_strided_slice %1 {offsets = [0, 0], sizes = [64, 64], strides = [1, 1]} : vector<128x64xbf16> to vector<64x64xbf16>
    %5 = vector.extract_strided_slice %1 {offsets = [64, 0], sizes = [64, 64], strides = [1, 1]} : vector<128x64xbf16> to vector<64x64xbf16>
    %6 = vector.extract_strided_slice %3 {offsets = [0, 0], sizes = [64, 64], strides = [1, 1]} : vector<128x64xbf16> to vector<64x64xbf16>
    %7 = vector.extract_strided_slice %3 {offsets = [64, 0], sizes = [64, 64], strides = [1, 1]} : vector<128x64xbf16> to vector<64x64xbf16>
    %c0_4 = arith.constant 0 : index
    %c0_5 = arith.constant 0 : index
    %c0_6 = arith.constant 0 : index
    %8 = vector.load %arg5[%c0_4, %c0_5, %c0_6] : memref<2x64x64xbf16, #tpu.memory_space<vmem>>, vector<1x64x64xbf16>
    %9 = vector.shape_cast %8 : vector<1x64x64xbf16> to vector<64x64xbf16>
    %c1_7 = arith.constant 1 : index
    %c0_8 = arith.constant 0 : index
    %c0_9 = arith.constant 0 : index
    %10 = vector.load %arg5[%c1_7, %c0_8, %c0_9] : memref<2x64x64xbf16, #tpu.memory_space<vmem>>, vector<1x64x64xbf16>
    %11 = vector.shape_cast %10 : vector<1x64x64xbf16> to vector<64x64xbf16>
    %c0_10 = arith.constant 0 : index
    %c0_11 = arith.constant 0 : index
    %12 = vector.load %arg6[%c0_10, %c0_11] : memref<5x64xf32, #tpu.memory_space<vmem>>, vector<1x64xf32>
    %c1_12 = arith.constant 1 : index
    %c0_13 = arith.constant 0 : index
    %13 = vector.load %arg6[%c1_12, %c0_13] : memref<5x64xf32, #tpu.memory_space<vmem>>, vector<1x64xf32>
    %c2 = arith.constant 2 : index
    %c0_14 = arith.constant 0 : index
    %14 = vector.load %arg6[%c2, %c0_14] : memref<5x64xf32, #tpu.memory_space<vmem>>, vector<1x64xf32>
    %c3 = arith.constant 3 : index
    %c0_15 = arith.constant 0 : index
    %15 = vector.load %arg6[%c3, %c0_15] : memref<5x64xf32, #tpu.memory_space<vmem>>, vector<1x64xf32>
    %c4 = arith.constant 4 : index
    %c0_16 = arith.constant 0 : index
    %16 = vector.load %arg6[%c4, %c0_16] : memref<5x64xf32, #tpu.memory_space<vmem>>, vector<1x64xf32>
    %c0_17 = arith.constant 0 : index
    %c0_18 = arith.constant 0 : index
    %17 = vector.load %arg1[%c0_17, %c0_18] : memref<128x64xbf16, #tpu.memory_space<vmem>>, vector<128x64xbf16>
    %c0_19 = arith.constant 0 : index
    %c0_20 = arith.constant 0 : index
    %18 = vector.load %arg2[%c0_19, %c0_20] : memref<128x64xbf16, #tpu.memory_space<vmem>>, vector<128x64xbf16>
    %c0_21 = arith.constant 0 : index
    %c0_22 = arith.constant 0 : index
    %19 = vector.load %arg3[%c0_21, %c0_22] : memref<16x64xbf16, #tpu.memory_space<vmem>>, vector<16x64xbf16>
    %cst = arith.constant dense<0.000000e+00> : vector<128x64xf32>
    %20 = tpu.matmul %17, %4, %cst {dimension_numbers = #tpu.dot_dimension_numbers<[1], [0], [0], [1], [0, 0, 1, 1], [], []>} : vector<128x64xbf16>, vector<64x64xbf16>, vector<128x64xf32> -> vector<128x64xf32>
    %cst_23 = arith.constant dense<0.000000e+00> : vector<128x64xf32>
    %21 = tpu.matmul %18, %5, %cst_23 {dimension_numbers = #tpu.dot_dimension_numbers<[1], [0], [0], [1], [0, 0, 1, 1], [], []>} : vector<128x64xbf16>, vector<64x64xbf16>, vector<128x64xf32> -> vector<128x64xf32>
    %22 = arith.addf %20, %21 : vector<128x64xf32>
    %23 = vector.broadcast %12 : vector<1x64xf32> to vector<128x64xf32>
    %24 = arith.addf %22, %23 : vector<128x64xf32>
    %cst_24 = arith.constant 0.000000e+00 : f32
    %25 = vector.broadcast %cst_24 : f32 to vector<128x64xf32>
    %26 = arith.maximumf %24, %25 : vector<128x64xf32>
    %27 = arith.truncf %26 : vector<128x64xf32> to vector<128x64xbf16>
    %cst_25 = arith.constant dense<0.000000e+00> : vector<128x64xf32>
    %28 = tpu.matmul %27, %9, %cst_25 {dimension_numbers = #tpu.dot_dimension_numbers<[1], [0], [0], [1], [0, 0, 1, 1], [], []>} : vector<128x64xbf16>, vector<64x64xbf16>, vector<128x64xf32> -> vector<128x64xf32>
    %29 = vector.broadcast %13 : vector<1x64xf32> to vector<128x64xf32>
    %30 = arith.addf %28, %29 : vector<128x64xf32>
    %cst_26 = arith.constant 0.000000e+00 : f32
    %31 = vector.broadcast %cst_26 : f32 to vector<128x64xf32>
    %32 = arith.maximumf %30, %31 : vector<128x64xf32>
    %33 = arith.truncf %32 : vector<128x64xf32> to vector<128x64xbf16>
    %34 = vector.shape_cast %32 : vector<128x64xf32> to vector<16x8x64xf32>
    %cst_27 = arith.constant dense<0.000000e+00> : vector<128x64xf32>
    %35 = tpu.matmul %33, %6, %cst_27 {dimension_numbers = #tpu.dot_dimension_numbers<[1], [0], [0], [1], [0, 0, 1, 1], [], []>} : vector<128x64xbf16>, vector<64x64xbf16>, vector<128x64xf32> -> vector<128x64xf32>
    %cst_28 = arith.constant dense<0.000000e+00> : vector<16x64xf32>
    %36 = tpu.matmul %19, %7, %cst_28 {dimension_numbers = #tpu.dot_dimension_numbers<[1], [0], [0], [1], [0, 0, 1, 1], [], []>} : vector<16x64xbf16>, vector<64x64xbf16>, vector<16x64xf32> -> vector<16x64xf32>
    %37 = vector.shape_cast %35 : vector<128x64xf32> to vector<16x8x64xf32>
    %38 = vector.shape_cast %36 : vector<16x64xf32> to vector<16x1x64xf32>
    %39 = vector.broadcast %38 : vector<16x1x64xf32> to vector<16x8x64xf32>
    %40 = arith.addf %37, %39 : vector<16x8x64xf32>
    %41 = vector.shape_cast %14 : vector<1x64xf32> to vector<1x1x64xf32>
    %42 = vector.broadcast %41 : vector<1x1x64xf32> to vector<16x8x64xf32>
    %43 = arith.addf %40, %42 : vector<16x8x64xf32>
    %cst_29 = arith.constant 0.000000e+00 : f32
    %44 = vector.broadcast %cst_29 : f32 to vector<16x8x64xf32>
    %45 = arith.maximumf %43, %44 : vector<16x8x64xf32>
    %46 = vector.shape_cast %45 : vector<16x8x64xf32> to vector<128x64xf32>
    %47 = arith.truncf %46 : vector<128x64xf32> to vector<128x64xbf16>
    %cst_30 = arith.constant dense<0.000000e+00> : vector<128x64xf32>
    %48 = tpu.matmul %47, %11, %cst_30 {dimension_numbers = #tpu.dot_dimension_numbers<[1], [0], [0], [1], [0, 0, 1, 1], [], []>} : vector<128x64xbf16>, vector<64x64xbf16>, vector<128x64xf32> -> vector<128x64xf32>
    %49 = vector.broadcast %15 : vector<1x64xf32> to vector<128x64xf32>
    %50 = arith.addf %48, %49 : vector<128x64xf32>
    %cst_31 = arith.constant 0.000000e+00 : f32
    %51 = vector.broadcast %cst_31 : f32 to vector<128x64xf32>
    %52 = arith.maximumf %50, %51 : vector<128x64xf32>
    %53 = vector.shape_cast %52 : vector<128x64xf32> to vector<16x8x64xf32>
    %54 = vector.shape_cast %16 : vector<1x64xf32> to vector<1x1x64xf32>
    %55 = vector.broadcast %54 : vector<1x1x64xf32> to vector<16x8x64xf32>
    %56 = arith.mulf %53, %55 : vector<16x8x64xf32>
    %cst_32 = arith.constant dense<0.000000e+00> : vector<16x8xf32>
    %57 = vector.multi_reduction <add>, %56, %cst_32 [2] : vector<16x8x64xf32> to vector<16x8xf32>
    %58 = vector.shape_cast %57 : vector<16x8xf32> to vector<16x8x1xf32>
    %cst_33 = arith.constant dense<0xFF800000> : vector<16x1xf32>
    %59 = vector.multi_reduction <maximumf>, %58, %cst_33 [1] : vector<16x8x1xf32> to vector<16x1xf32>
    %60 = vector.shape_cast %59 : vector<16x1xf32> to vector<16x1x1xf32>
    %61 = vector.broadcast %60 : vector<16x1x1xf32> to vector<16x8x1xf32>
    %62 = arith.subf %58, %61 : vector<16x8x1xf32>
    %63 = math.exp %62 : vector<16x8x1xf32>
    %cst_34 = arith.constant dense<0.000000e+00> : vector<16x1xf32>
    %64 = vector.multi_reduction <add>, %63, %cst_34 [1] : vector<16x8x1xf32> to vector<16x1xf32>
    %65 = vector.shape_cast %64 : vector<16x1xf32> to vector<16x1x1xf32>
    %66 = tpu.reciprocal %65 {approx = true} : vector<16x1x1xf32> -> vector<16x1x1xf32>
    %67 = vector.broadcast %66 : vector<16x1x1xf32> to vector<16x8x1xf32>
    %68 = arith.mulf %63, %67 : vector<16x8x1xf32>
    %69 = vector.broadcast %68 : vector<16x8x1xf32> to vector<16x8x64xf32>
    %70 = arith.mulf %34, %69 : vector<16x8x64xf32>
    %cst_35 = arith.constant dense<0.000000e+00> : vector<16x64xf32>
    %71 = vector.multi_reduction <add>, %70, %cst_35 [1] : vector<16x8x64xf32> to vector<16x64xf32>
    %72 = vector.shape_cast %71 : vector<16x64xf32> to vector<8x128xf32>
    %c0_36 = arith.constant 0 : index
    %c0_37 = arith.constant 0 : index
    %73 = vector.load %arg7[%c0_36, %c0_37] : memref<8x128xf32, #tpu.memory_space<vmem>>, vector<8x128xf32>
    tpu.vector_store %arg7[%c0_36, %c0_37], %72 {strides = array<i32>} : memref<8x128xf32, #tpu.memory_space<vmem>>, vector<8x128xf32>,
    return
  }
  func.func @transform_0(%arg0: i32) -> (i32, i32) {
    %c0_i32 = arith.constant 0 : i32
    %c0_i32_0 = arith.constant 0 : i32
    return %arg0, %c0_i32 : i32, i32
  }
  func.func @transform_1(%arg0: i32) -> (i32, i32) {
    %c0_i32 = arith.constant 0 : i32
    %c0_i32_0 = arith.constant 0 : i32
    return %arg0, %c0_i32 : i32, i32
  }
  func.func @transform_2(%arg0: i32) -> (i32, i32) {
    %c0_i32 = arith.constant 0 : i32
    %c0_i32_0 = arith.constant 0 : i32
    return %arg0, %c0_i32 : i32, i32
  }
  func.func @transform_3(%arg0: i32) -> (i32, i32, i32) {
    %c0_i32 = arith.constant 0 : i32
    %c0_i32_0 = arith.constant 0 : i32
    %c0_i32_1 = arith.constant 0 : i32
    %c0_i32_2 = arith.constant 0 : i32
    return %c0_i32, %c0_i32_0, %c0_i32_1 : i32, i32, i32
  }
  func.func @transform_4(%arg0: i32) -> (i32, i32, i32) {
    %c0_i32 = arith.constant 0 : i32
    %c0_i32_0 = arith.constant 0 : i32
    %c0_i32_1 = arith.constant 0 : i32
    %c0_i32_2 = arith.constant 0 : i32
    return %c0_i32, %c0_i32_0, %c0_i32_1 : i32, i32, i32
  }
  func.func @transform_5(%arg0: i32) -> (i32, i32) {
    %c0_i32 = arith.constant 0 : i32
    %c0_i32_0 = arith.constant 0 : i32
    %c0_i32_1 = arith.constant 0 : i32
    return %c0_i32, %c0_i32_0 : i32, i32
  }
  func.func @transform_6(%arg0: i32) -> (i32, i32) {
    %c0_i32 = arith.constant 0 : i32
    %c0_i32_0 = arith.constant 0 : i32
    return %arg0, %c0_i32 : i32, i32
  }
}

module attributes {stable_mosaic.version = 11 : i64} {
  func.func @user_encode_kernel(%arg0: i32, %arg1: memref<128x64xbf16, #tpu.memory_space<vmem>>, %arg2: memref<128x64xbf16, #tpu.memory_space<vmem>>, %arg3: memref<16x64xbf16, #tpu.memory_space<vmem>>, %arg4: memref<2x128x64xbf16, #tpu.memory_space<vmem>>, %arg5: memref<2x64x64xbf16, #tpu.memory_space<vmem>>, %arg6: memref<5x64xf32, #tpu.memory_space<vmem>>, %arg7: memref<16x64xf32, #tpu.memory_space<vmem>>) attributes {dimension_semantics = [#tpu.dimension_semantics<parallel>], iteration_bounds = array<i64: 2>, scalar_prefetch = 0 : i64, scratch_operands = 0 : i64, tpu.core_type = #tpu.core_type<tc>, window_params = [{transform_indices = @transform_0, window_bounds = array<i64: 128, 64>}, {transform_indices = @transform_1, window_bounds = array<i64: 128, 64>}, {transform_indices = @transform_2, window_bounds = array<i64: 16, 64>}, {pipeline_mode = #tpu.pipeline_mode<synchronous>, transform_indices = @transform_3, window_bounds = array<i64: 2, 128, 64>}, {pipeline_mode = #tpu.pipeline_mode<synchronous>, transform_indices = @transform_4, window_bounds = array<i64: 2, 64, 64>}, {pipeline_mode = #tpu.pipeline_mode<synchronous>, transform_indices = @transform_5, window_bounds = array<i64: 5, 64>}, {transform_indices = @transform_6, window_bounds = array<i64: 16, 64>}]} {
    %c0 = arith.constant 0 : index
    %c0_0 = arith.constant 0 : index
    %c0_1 = arith.constant 0 : index
    %0 = vector.load %arg4[%c0, %c0_0, %c0_1] : memref<2x128x64xbf16, #tpu.memory_space<vmem>>, vector<1x128x64xbf16>
    %1 = vector.shape_cast %0 : vector<1x128x64xbf16> to vector<128x64xbf16>
    %c1 = arith.constant 1 : index
    %c0_2 = arith.constant 0 : index
    %c0_3 = arith.constant 0 : index
    %2 = vector.load %arg4[%c1, %c0_2, %c0_3] : memref<2x128x64xbf16, #tpu.memory_space<vmem>>, vector<1x128x64xbf16>
    %3 = vector.shape_cast %2 : vector<1x128x64xbf16> to vector<128x64xbf16>
    %4 = vector.extract_strided_slice %1 {offsets = [0, 0], sizes = [64, 64], strides = [1, 1]} : vector<128x64xbf16> to vector<64x64xbf16>
    %5 = vector.extract_strided_slice %1 {offsets = [64, 0], sizes = [64, 64], strides = [1, 1]} : vector<128x64xbf16> to vector<64x64xbf16>
    %6 = vector.extract_strided_slice %3 {offsets = [0, 0], sizes = [64, 64], strides = [1, 1]} : vector<128x64xbf16> to vector<64x64xbf16>
    %7 = vector.extract_strided_slice %3 {offsets = [64, 0], sizes = [64, 64], strides = [1, 1]} : vector<128x64xbf16> to vector<64x64xbf16>
    %c0_4 = arith.constant 0 : index
    %c0_5 = arith.constant 0 : index
    %c0_6 = arith.constant 0 : index
    %8 = vector.load %arg5[%c0_4, %c0_5, %c0_6] : memref<2x64x64xbf16, #tpu.memory_space<vmem>>, vector<1x64x64xbf16>
    %9 = vector.shape_cast %8 : vector<1x64x64xbf16> to vector<64x64xbf16>
    %c1_7 = arith.constant 1 : index
    %c0_8 = arith.constant 0 : index
    %c0_9 = arith.constant 0 : index
    %10 = vector.load %arg5[%c1_7, %c0_8, %c0_9] : memref<2x64x64xbf16, #tpu.memory_space<vmem>>, vector<1x64x64xbf16>
    %11 = vector.shape_cast %10 : vector<1x64x64xbf16> to vector<64x64xbf16>
    %c0_10 = arith.constant 0 : index
    %c0_11 = arith.constant 0 : index
    %12 = vector.load %arg6[%c0_10, %c0_11] : memref<5x64xf32, #tpu.memory_space<vmem>>, vector<1x64xf32>
    %c1_12 = arith.constant 1 : index
    %c0_13 = arith.constant 0 : index
    %13 = vector.load %arg6[%c1_12, %c0_13] : memref<5x64xf32, #tpu.memory_space<vmem>>, vector<1x64xf32>
    %c2 = arith.constant 2 : index
    %c0_14 = arith.constant 0 : index
    %14 = vector.load %arg6[%c2, %c0_14] : memref<5x64xf32, #tpu.memory_space<vmem>>, vector<1x64xf32>
    %c3 = arith.constant 3 : index
    %c0_15 = arith.constant 0 : index
    %15 = vector.load %arg6[%c3, %c0_15] : memref<5x64xf32, #tpu.memory_space<vmem>>, vector<1x64xf32>
    %c4 = arith.constant 4 : index
    %c0_16 = arith.constant 0 : index
    %16 = vector.load %arg6[%c4, %c0_16] : memref<5x64xf32, #tpu.memory_space<vmem>>, vector<1x64xf32>
    %c0_17 = arith.constant 0 : index
    %c0_18 = arith.constant 0 : index
    %17 = vector.load %arg1[%c0_17, %c0_18] : memref<128x64xbf16, #tpu.memory_space<vmem>>, vector<128x64xbf16>
    %c0_19 = arith.constant 0 : index
    %c0_20 = arith.constant 0 : index
    %18 = vector.load %arg2[%c0_19, %c0_20] : memref<128x64xbf16, #tpu.memory_space<vmem>>, vector<128x64xbf16>
    %c0_21 = arith.constant 0 : index
    %c0_22 = arith.constant 0 : index
    %19 = vector.load %arg3[%c0_21, %c0_22] : memref<16x64xbf16, #tpu.memory_space<vmem>>, vector<16x64xbf16>
    %cst = arith.constant dense<0.000000e+00> : vector<128x64xf32>
    %20 = tpu.matmul %17, %4, %cst {dimension_numbers = #tpu.dot_dimension_numbers<[1], [0], [0], [1], [0, 0, 1, 1], [], []>} : vector<128x64xbf16>, vector<64x64xbf16>, vector<128x64xf32> -> vector<128x64xf32>
    %cst_23 = arith.constant dense<0.000000e+00> : vector<128x64xf32>
    %21 = tpu.matmul %18, %5, %cst_23 {dimension_numbers = #tpu.dot_dimension_numbers<[1], [0], [0], [1], [0, 0, 1, 1], [], []>} : vector<128x64xbf16>, vector<64x64xbf16>, vector<128x64xf32> -> vector<128x64xf32>
    %22 = arith.addf %20, %21 : vector<128x64xf32>
    %23 = vector.broadcast %12 : vector<1x64xf32> to vector<128x64xf32>
    %24 = arith.addf %22, %23 : vector<128x64xf32>
    %cst_24 = arith.constant 0.000000e+00 : f32
    %25 = vector.broadcast %cst_24 : f32 to vector<128x64xf32>
    %26 = arith.maximumf %24, %25 : vector<128x64xf32>
    %27 = arith.truncf %26 : vector<128x64xf32> to vector<128x64xbf16>
    %cst_25 = arith.constant dense<0.000000e+00> : vector<128x64xf32>
    %28 = tpu.matmul %27, %9, %cst_25 {dimension_numbers = #tpu.dot_dimension_numbers<[1], [0], [0], [1], [0, 0, 1, 1], [], []>} : vector<128x64xbf16>, vector<64x64xbf16>, vector<128x64xf32> -> vector<128x64xf32>
    %29 = vector.broadcast %13 : vector<1x64xf32> to vector<128x64xf32>
    %30 = arith.addf %28, %29 : vector<128x64xf32>
    %cst_26 = arith.constant 0.000000e+00 : f32
    %31 = vector.broadcast %cst_26 : f32 to vector<128x64xf32>
    %32 = arith.maximumf %30, %31 : vector<128x64xf32>
    %33 = arith.truncf %32 : vector<128x64xf32> to vector<128x64xbf16>
    %34 = vector.shape_cast %32 : vector<128x64xf32> to vector<16x8x64xf32>
    %cst_27 = arith.constant dense<0.000000e+00> : vector<128x64xf32>
    %35 = tpu.matmul %33, %6, %cst_27 {dimension_numbers = #tpu.dot_dimension_numbers<[1], [0], [0], [1], [0, 0, 1, 1], [], []>} : vector<128x64xbf16>, vector<64x64xbf16>, vector<128x64xf32> -> vector<128x64xf32>
    %cst_28 = arith.constant dense<0.000000e+00> : vector<16x64xf32>
    %36 = tpu.matmul %19, %7, %cst_28 {dimension_numbers = #tpu.dot_dimension_numbers<[1], [0], [0], [1], [0, 0, 1, 1], [], []>} : vector<16x64xbf16>, vector<64x64xbf16>, vector<16x64xf32> -> vector<16x64xf32>
    %37 = vector.shape_cast %35 : vector<128x64xf32> to vector<16x8x64xf32>
    %38 = vector.shape_cast %36 : vector<16x64xf32> to vector<16x1x64xf32>
    %39 = vector.broadcast %38 : vector<16x1x64xf32> to vector<16x8x64xf32>
    %40 = arith.addf %37, %39 : vector<16x8x64xf32>
    %41 = vector.shape_cast %14 : vector<1x64xf32> to vector<1x1x64xf32>
    %42 = vector.broadcast %41 : vector<1x1x64xf32> to vector<16x8x64xf32>
    %43 = arith.addf %40, %42 : vector<16x8x64xf32>
    %cst_29 = arith.constant 0.000000e+00 : f32
    %44 = vector.broadcast %cst_29 : f32 to vector<16x8x64xf32>
    %45 = arith.maximumf %43, %44 : vector<16x8x64xf32>
    %46 = vector.shape_cast %45 : vector<16x8x64xf32> to vector<128x64xf32>
    %47 = arith.truncf %46 : vector<128x64xf32> to vector<128x64xbf16>
    %cst_30 = arith.constant dense<0.000000e+00> : vector<128x64xf32>
    %48 = tpu.matmul %47, %11, %cst_30 {dimension_numbers = #tpu.dot_dimension_numbers<[1], [0], [0], [1], [0, 0, 1, 1], [], []>} : vector<128x64xbf16>, vector<64x64xbf16>, vector<128x64xf32> -> vector<128x64xf32>
    %49 = vector.broadcast %15 : vector<1x64xf32> to vector<128x64xf32>
    %50 = arith.addf %48, %49 : vector<128x64xf32>
    %cst_31 = arith.constant 0.000000e+00 : f32
    %51 = vector.broadcast %cst_31 : f32 to vector<128x64xf32>
    %52 = arith.maximumf %50, %51 : vector<128x64xf32>
    %53 = vector.shape_cast %52 : vector<128x64xf32> to vector<16x8x64xf32>
    %54 = vector.shape_cast %16 : vector<1x64xf32> to vector<1x1x64xf32>
    %55 = vector.broadcast %54 : vector<1x1x64xf32> to vector<16x8x64xf32>
    %56 = arith.mulf %53, %55 : vector<16x8x64xf32>
    %cst_32 = arith.constant dense<0.000000e+00> : vector<16x8xf32>
    %57 = vector.multi_reduction <add>, %56, %cst_32 [2] : vector<16x8x64xf32> to vector<16x8xf32>
    %58 = vector.shape_cast %57 : vector<16x8xf32> to vector<16x8x1xf32>
    %cst_33 = arith.constant dense<0xFF800000> : vector<16x1xf32>
    %59 = vector.multi_reduction <maximumf>, %58, %cst_33 [1] : vector<16x8x1xf32> to vector<16x1xf32>
    %60 = vector.shape_cast %59 : vector<16x1xf32> to vector<16x1x1xf32>
    %61 = vector.broadcast %60 : vector<16x1x1xf32> to vector<16x8x1xf32>
    %62 = arith.subf %58, %61 : vector<16x8x1xf32>
    %63 = math.exp %62 : vector<16x8x1xf32>
    %cst_34 = arith.constant dense<0.000000e+00> : vector<16x1xf32>
    %64 = vector.multi_reduction <add>, %63, %cst_34 [1] : vector<16x8x1xf32> to vector<16x1xf32>
    %65 = vector.shape_cast %64 : vector<16x1xf32> to vector<16x1x1xf32>
    %66 = tpu.reciprocal %65 {approx = true} : vector<16x1x1xf32> -> vector<16x1x1xf32>
    %67 = vector.broadcast %66 : vector<16x1x1xf32> to vector<16x8x1xf32>
    %68 = arith.mulf %63, %67 : vector<16x8x1xf32>
    %69 = vector.broadcast %68 : vector<16x8x1xf32> to vector<16x8x64xf32>
    %70 = arith.mulf %34, %69 : vector<16x8x64xf32>
    %cst_35 = arith.constant dense<0.000000e+00> : vector<16x64xf32>
    %71 = vector.multi_reduction <add>, %70, %cst_35 [1] : vector<16x8x64xf32> to vector<16x64xf32>
    %c0_36 = arith.constant 0 : index
    %c0_37 = arith.constant 0 : index
    %72 = vector.load %arg7[%c0_36, %c0_37] : memref<16x64xf32, #tpu.memory_space<vmem>>, vector<16x64xf32>
    tpu.vector_store %arg7[%c0_36, %c0_37], %71 {strides = array<i32>} : memref<16x64xf32, #tpu.memory_space<vmem>>, vector<16x64xf32>,
    return
  }
  func.func @transform_0(%arg0: i32) -> (i32, i32) {
    %c0_i32 = arith.constant 0 : i32
    %c0_i32_0 = arith.constant 0 : i32
    return %arg0, %c0_i32 : i32, i32
  }
  func.func @transform_1(%arg0: i32) -> (i32, i32) {
    %c0_i32 = arith.constant 0 : i32
    %c0_i32_0 = arith.constant 0 : i32
    return %arg0, %c0_i32 : i32, i32
  }
  func.func @transform_2(%arg0: i32) -> (i32, i32) {
    %c0_i32 = arith.constant 0 : i32
    %c0_i32_0 = arith.constant 0 : i32
    return %arg0, %c0_i32 : i32, i32
  }
  func.func @transform_3(%arg0: i32) -> (i32, i32, i32) {
    %c0_i32 = arith.constant 0 : i32
    %c0_i32_0 = arith.constant 0 : i32
    %c0_i32_1 = arith.constant 0 : i32
    %c0_i32_2 = arith.constant 0 : i32
    return %c0_i32, %c0_i32_0, %c0_i32_1 : i32, i32, i32
  }
  func.func @transform_4(%arg0: i32) -> (i32, i32, i32) {
    %c0_i32 = arith.constant 0 : i32
    %c0_i32_0 = arith.constant 0 : i32
    %c0_i32_1 = arith.constant 0 : i32
    %c0_i32_2 = arith.constant 0 : i32
    return %c0_i32, %c0_i32_0, %c0_i32_1 : i32, i32, i32
  }
  func.func @transform_5(%arg0: i32) -> (i32, i32) {
    %c0_i32 = arith.constant 0 : i32
    %c0_i32_0 = arith.constant 0 : i32
    %c0_i32_1 = arith.constant 0 : i32
    return %c0_i32, %c0_i32_0 : i32, i32
  }
  func.func @transform_6(%arg0: i32) -> (i32, i32) {
    %c0_i32 = arith.constant 0 : i32
    %c0_i32_0 = arith.constant 0 : i32
    return %arg0, %c0_i32 : i32, i32
  }
}

</mosaic_0001>

<llo_original>
// kernel: tpu_custom_call.1
$region0: #{tpu_custom_call.1}
  #allocation0 [shape = 'u32[]', space=smem, size = 0x4, offset = 0x4, fixed_abs, tag = 'smem constant byte address 0x4 - core index']
  #allocation1 [shape = 'u32[72,128]{1,0:T(1,128)}', space=vmem, size = 0x9000, scoped, tag = 'internal scratch']
  %s0 = inlined_call_operand.vmem [shape: bf16[256,64], index: 0, kind: input, shape index: {}]
  %s1 = inlined_call_operand.vmem [shape: bf16[256,64], index: 1, kind: input, shape index: {}]
  %s2 = inlined_call_operand.vmem [shape: bf16[32,64], index: 2, kind: input, shape index: {}]
  %s3 = inlined_call_operand.vmem [shape: bf16[2,128,64], index: 3, kind: input, shape index: {}]
  %s4 = inlined_call_operand.vmem [shape: bf16[2,64,64], index: 4, kind: input, shape index: {}]
  %s5 = inlined_call_operand.vmem [shape: f32[5,64], index: 5, kind: input, shape index: {}]
  %s6 = inlined_call_operand.hbm [shape: f32[32,64], index: 6, kind: output, shape index: {}]
  %s7 = sld [smem:[#allocation0]]
  $region57: #{tpu_custom_call.1} parent=0
    _
  %s9 = ssub.s32 1, %s7
  %s10 = scalar_select 0, %s9, %s7
  $region1: #{tpu_custom_call.1} parent=0
    #allocation2 [shape = 'u8[16384]{0}', space=vmem, size = 0x4000, scoped, tag = 'output window, operand 0']
    #allocation3 [shape = 's32[2]{0}', space=sflag, size = 0x8, scoped, tag = 'scoped memory for tpu_custom_call.1']
    %11 = vsyncpa [#allocation3], 0
    %s12 = scalar_lea.sflag [#allocation3], 1
    %13 = vsyncpa %s12, 0
    loop: start=0, step=1, limit=4
    $region2: #{tpu_custom_call.1} parent=1 // loop_pre_header
      _
    $region3: #{tpu_custom_call.1} parent=1 // loop_header
      %s15 = sphi 0, %s19
      %p16 = scmp.ge.s32.totalorder %s15, 4
      %s25 = sphi 0, %s27
      %s28 = sphi 0, %s25
      %s29 = sphi 0, %s28
      %s45 = sphi 0, %s29
      %s51 = sphi 0, %s53
      %s54 = sphi 0, %s51
      %s55 = sphi 0, %s54
      %s71 = sphi 0, %s55
      %s77 = sphi 0, %s79
      %s80 = sphi 0, %s77
      %s81 = sphi 0, %s80
      %s97 = sphi 0, %s81
      %s101 = sphi 0, %s101
      %s103 = sphi 0, %s101
      %s104 = sphi 0, %s103
      %s118 = sphi 0, %s104
      %s122 = sphi 0, %s122
      %s124 = sphi 0, %s122
      %s125 = sphi 0, %s124
      %s139 = sphi 0, %s125
      %s143 = sphi 0, %s143
      %s145 = sphi 0, %s143
      %s146 = sphi 0, %s145
      %s160 = sphi 0, %s146
      %s166 = sphi 0, %s168
      %s169 = sphi 0, %s166
      %s170 = sphi 0, %s169
      %s186 = sphi 0, %s170
    $region4: #{tpu_custom_call.1} parent=1 // loop_header_branch
      %18 = sbr.rel (%p16) target = $region8
    $region5: #{tpu_custom_call.1} parent=1 // loop_body
      %s20 = ssub.s32 %s15, 1
      %s21 = ssub.s32 %s15, 2
      %s22 = sadd.s32 %s15, 1
      %s23 = ssub.s32 %s15, %s22
      %p24 = scmp.eq.s32.totalorder %s23, 0
      %s26 = sadd.s32 %s25, 1
      %s27 = scalar_select %p24, %s25, %s26
      %p30 = pneg %p24
      %p31 = scmp.eq.s32.totalorder %s15, 1
      %p32 = por %p30, %p31
      %p33 = scmp.ne.s32.totalorder %s25, %s28
      %p34 = scmp.eq.s32.totalorder %s15, 0
      %p35 = por %p33, %p34
      %p36 = scmp.ne.s32.totalorder %s25, %s28
      %p37 = scmp.eq.s32.totalorder %s20, 1
      %p38 = por %p36, %p37
      %p39 = scmp.ne.s32.totalorder %s28, %s29
      %p40 = scmp.eq.s32.totalorder %s20, 0
      %p41 = por %p39, %p40
      %p42 = scmp.ne.s32.totalorder %s28, %s29
      %p43 = scmp.eq.s32.totalorder %s21, 1
      %p44 = por %p42, %p43
      %p46 = scmp.ne.s32.totalorder %s29, %s45
      %p47 = scmp.eq.s32.totalorder %s21, 0
      %p48 = por %p46, %p47
      %s49 = ssub.s32 %s15, %s22
      %p50 = scmp.eq.s32.totalorder %s49, 0
      %s52 = sadd.s32 %s51, 1
      %s53 = scalar_select %p50, %s51, %s52
      %p56 = pneg %p50
      %p57 = scmp.eq.s32.totalorder %s15, 1
      %p58 = por %p56, %p57
      %p59 = scmp.ne.s32.totalorder %s51, %s54
      %p60 = scmp.eq.s32.totalorder %s15, 0
      %p61 = por %p59, %p60
      %p62 = scmp.ne.s32.totalorder %s51, %s54
      %p63 = scmp.eq.s32.totalorder %s20, 1
      %p64 = por %p62, %p63
      %p65 = scmp.ne.s32.totalorder %s54, %s55
      %p66 = scmp.eq.s32.totalorder %s20, 0
      %p67 = por %p65, %p66
      %p68 = scmp.ne.s32.totalorder %s54, %s55
      %p69 = scmp.eq.s32.totalorder %s21, 1
      %p70 = por %p68, %p69
      %p72 = scmp.ne.s32.totalorder %s55, %s71
      %p73 = scmp.eq.s32.totalorder %s21, 0
      %p74 = por %p72, %p73
      %s75 = ssub.s32 %s15, %s22
      %p76 = scmp.eq.s32.totalorder %s75, 0
      %s78 = sadd.s32 %s77, 1
      %s79 = scalar_select %p76, %s77, %s78
      %p82 = pneg %p76
      %p83 = scmp.eq.s32.totalorder %s15, 1
      %p84 = por %p82, %p83
      %p85 = scmp.ne.s32.totalorder %s77, %s80
      %p86 = scmp.eq.s32.totalorder %s15, 0
      %p87 = por %p85, %p86
      %p88 = scmp.ne.s32.totalorder %s77, %s80
      %p89 = scmp.eq.s32.totalorder %s20, 1
      %p90 = por %p88, %p89
      %p91 = scmp.ne.s32.totalorder %s80, %s81
      %p92 = scmp.eq.s32.totalorder %s20, 0
      %p93 = por %p91, %p92
      %p94 = scmp.ne.s32.totalorder %s80, %s81
      %p95 = scmp.eq.s32.totalorder %s21, 1
      %p96 = por %p94, %p95
      %p98 = scmp.ne.s32.totalorder %s81, %s97
      %p99 = scmp.eq.s32.totalorder %s21, 0
      %p100 = por %p98, %p99
      %s102 = sadd.s32 %s101, 1
      %p105 = scmp.eq.s32.totalorder %s15, 1
      %p106 = scmp.ne.s32.totalorder %s101, %s103
      %p107 = scmp.eq.s32.totalorder %s15, 0
      %p108 = por %p106, %p107
      %p109 = scmp.ne.s32.totalorder %s101, %s103
      %p110 = scmp.eq.s32.totalorder %s20, 1
      %p111 = por %p109, %p110
      %p112 = scmp.ne.s32.totalorder %s103, %s104
      %p113 = scmp.eq.s32.totalorder %s20, 0
      %p114 = por %p112, %p113
      %p115 = scmp.ne.s32.totalorder %s103, %s104
      %p116 = scmp.eq.s32.totalorder %s21, 1
      %p117 = por %p115, %p116
      %p119 = scmp.ne.s32.totalorder %s104, %s118
      %p120 = scmp.eq.s32.totalorder %s21, 0
      %p121 = por %p119, %p120
      %s123 = sadd.s32 %s122, 1
      %p126 = scmp.eq.s32.totalorder %s15, 1
      %p127 = scmp.ne.s32.totalorder %s122, %s124
      %p128 = scmp.eq.s32.totalorder %s15, 0
      %p129 = por %p127, %p128
      %p130 = scmp.ne.s32.totalorder %s122, %s124
      %p131 = scmp.eq.s32.totalorder %s20, 1
      %p132 = por %p130, %p131
      %p133 = scmp.ne.s32.totalorder %s124, %s125
      %p134 = scmp.eq.s32.totalorder %s20, 0
      %p135 = por %p133, %p134
      %p136 = scmp.ne.s32.totalorder %s124, %s125
      %p137 = scmp.eq.s32.totalorder %s21, 1
      %p138 = por %p136, %p137
      %p140 = scmp.ne.s32.totalorder %s125, %s139
      %p141 = scmp.eq.s32.totalorder %s21, 0
      %p142 = por %p140, %p141
      %s144 = sadd.s32 %s143, 1
      %p147 = scmp.eq.s32.totalorder %s15, 1
      %p148 = scmp.ne.s32.totalorder %s143, %s145
      %p149 = scmp.eq.s32.totalorder %s15, 0
      %p150 = por %p148, %p149
      %p151 = scmp.ne.s32.totalorder %s143, %s145
      %p152 = scmp.eq.s32.totalorder %s20, 1
      %p153 = por %p151, %p152
      %p154 = scmp.ne.s32.totalorder %s145, %s146
      %p155 = scmp.eq.s32.totalorder %s20, 0
      %p156 = por %p154, %p155
      %p157 = scmp.ne.s32.totalorder %s145, %s146
      %p158 = scmp.eq.s32.totalorder %s21, 1
      %p159 = por %p157, %p158
      %p161 = scmp.ne.s32.totalorder %s146, %s160
      %p162 = scmp.eq.s32.totalorder %s21, 0
      %p163 = por %p161, %p162
      %s164 = ssub.s32 %s15, %s22
      %p165 = scmp.eq.s32.totalorder %s164, 0
      %s167 = sadd.s32 %s166, 1
      %s168 = scalar_select %p165, %s166, %s167
      %p171 = pneg %p165
      %p172 = scmp.eq.s32.totalorder %s15, 1
      %p173 = por %p171, %p172
      %p174 = scmp.ne.s32.totalorder %s166, %s169
      %p175 = scmp.eq.s32.totalorder %s15, 0
      %p176 = por %p174, %p175
      %p177 = scmp.ne.s32.totalorder %s166, %s169
      %p178 = scmp.eq.s32.totalorder %s20, 1
      %p179 = por %p177, %p178
      %p180 = scmp.ne.s32.totalorder %s169, %s170
      %p181 = scmp.eq.s32.totalorder %s20, 0
      %p182 = por %p180, %p181
      %p183 = scmp.ne.s32.totalorder %s169, %s170
      %p184 = scmp.eq.s32.totalorder %s21, 1
      %p185 = por %p183, %p184
      %p187 = scmp.ne.s32.totalorder %s170, %s186
      %p188 = scmp.eq.s32.totalorder %s21, 0
      %p189 = por %p187, %p188
      %p190 = scmp.le.s32.totalorder 1, %s15
      %p191 = scmp.lt.s32.totalorder %s15, 3
      %p192 = pnand %p190, %p191
      %p193 = pneg %p192
      // Predicated region
      $region9: #{tpu_custom_call.1} parent=5 // pred_check
        _
      $region10: #{tpu_custom_call.1} parent=5 // pred_check_branch
        %195 = sbr.rel (%p192) target = $region12
      $region11: #{tpu_custom_call.1} parent=5 // pred_region
        %s196 = ssub.s32 %s15, 1
        // Predicated region
        $region13: #{tpu_custom_call.1} parent=11 // pred_check
          %p197 = pneg %p114
        $region14: #{tpu_custom_call.1} parent=11 // pred_check_branch
          %199 = sbr.rel (%p197) target = $region16
        $region15: #{tpu_custom_call.1} parent=11 // pred_region
          _
        $region16: #{tpu_custom_call.1} parent=11 // pred_fallthru
          _
        // Predicated region
        $region17: #{tpu_custom_call.1} parent=11 // pred_check
          %p200 = pneg %p135
        $region18: #{tpu_custom_call.1} parent=11 // pred_check_branch
          %202 = sbr.rel (%p200) target = $region20
        $region19: #{tpu_custom_call.1} parent=11 // pred_region
          _
        $region20: #{tpu_custom_call.1} parent=11 // pred_fallthru
          _
        // Predicated region
        $region21: #{tpu_custom_call.1} parent=11 // pred_check
          %p203 = pneg %p156
        $region22: #{tpu_custom_call.1} parent=11 // pred_check_branch
          %205 = sbr.rel (%p203) target = $region24
        $region23: #{tpu_custom_call.1} parent=11 // pred_region
          _
        $region24: #{tpu_custom_call.1} parent=11 // pred_fallthru
          _
      $region12: #{tpu_custom_call.1} parent=5 // pred_fallthru
        _
      %p206 = scmp.lt.s32.totalorder %s15, 2
      // Predicated region
      $region25: #{tpu_custom_call.1} parent=5 // pred_check
        %p207 = pneg %p206
      $region26: #{tpu_custom_call.1} parent=5 // pred_check_branch
        %209 = sbr.rel (%p207) target = $region28
      $region27: #{tpu_custom_call.1} parent=5 // pred_region
        // Predicated region
        $region29: #{tpu_custom_call.1} parent=27 // pred_check
          %p210 = pneg %p35
        $region30: #{tpu_custom_call.1} parent=27 // pred_check_branch
          %212 = sbr.rel (%p210) target = $region32
        $region31: #{tpu_custom_call.1} parent=27 // pred_region
          %s213 = smul.u32 16, %s15
          %p214 = scmp.lt.s32.totalorder %s213, 31
          %s215 = scalar_select %p214, %s213, 31
          %s216 = smul.addr %s215, 4
          %s217 = scalar_lea.vmem %s0, %s216
          %s218 = smul.u32 16, %s15
        $region32: #{tpu_custom_call.1} parent=27 // pred_fallthru
          _
        // Predicated region
        $region33: #{tpu_custom_call.1} parent=27 // pred_check
          %p219 = pneg %p61
        $region34: #{tpu_custom_call.1} parent=27 // pred_check_branch
          %221 = sbr.rel (%p219) target = $region36
        $region35: #{tpu_custom_call.1} parent=27 // pred_region
          %s222 = smul.u32 16, %s15
          %p223 = scmp.lt.s32.totalorder %s222, 31
          %s224 = scalar_select %p223, %s222, 31
          %s225 = smul.addr %s224, 4
          %s226 = scalar_lea.vmem %s1, %s225
          %s227 = smul.u32 16, %s15
        $region36: #{tpu_custom_call.1} parent=27 // pred_fallthru
          _
        // Predicated region
        $region37: #{tpu_custom_call.1} parent=27 // pred_check
          %p228 = pneg %p87
        $region38: #{tpu_custom_call.1} parent=27 // pred_check_branch
          %230 = sbr.rel (%p228) target = $region40
        $region39: #{tpu_custom_call.1} parent=27 // pred_region
          %s231 = smul.u32 2, %s15
          %p232 = scmp.lt.s32.totalorder %s231, 3
          %s233 = scalar_select %p232, %s231, 3
          %s234 = smul.addr %s233, 4
          %s235 = scalar_lea.vmem %s2, %s234
          %s236 = smul.u32 2, %s15
        $region40: #{tpu_custom_call.1} parent=27 // pred_fallthru
          _
      $region28: #{tpu_custom_call.1} parent=5 // pred_fallthru
        _
      %p237 = scmp.le.s32.totalorder 1, %s15
      %p238 = scmp.lt.s32.totalorder %s15, 3
      %p239 = pnand %p237, %p238
      %p240 = pneg %p239
      // Predicated region
      $region41: #{tpu_custom_call.1} parent=5 // pred_check
        _
      $region42: #{tpu_custom_call.1} parent=5 // pred_check_branch
        %242 = sbr.rel (%p239) target = $region44
      $region43: #{tpu_custom_call.1} parent=5 // pred_region
        %s243 = ssub.s32 %s15, 1
        %s244 = smul.u32 16, %s20
        %p245 = scmp.lt.s32.totalorder %s244, 31
        %s246 = scalar_select %p245, %s244, 31
        %s247 = smul.addr %s246, 4
        %s248 = scalar_lea.vmem %s0, %s247
        %p249 = pneg %p41
        %p250 = pneg %p38
        %s251 = smul.u32 16, %s20
        %p252 = scmp.lt.s32.totalorder %s251, 31
        %s253 = scalar_select %p252, %s251, 31
        %s254 = smul.addr %s253, 4
        %s255 = scalar_lea.vmem %s1, %s254
        %p256 = pneg %p67
        %p257 = pneg %p64
        %s258 = smul.u32 2, %s20
        %p259 = scmp.lt.s32.totalorder %s258, 3
        %s260 = scalar_select %p259, %s258, 3
        %s261 = smul.addr %s260, 4
        %s262 = scalar_lea.vmem %s2, %s261
        %p263 = pneg %p93
        %p264 = pneg %p90
        %p265 = pneg %p114
        %p266 = pneg %p111
        %p267 = pneg %p135
        %p268 = pneg %p132
        %p269 = pneg %p156
        %p270 = pneg %p153
        %p271 = pneg %p182
        %p272 = pneg %p179
        %s273 = sand.u32 %s169, 1
        %s274 = scalar_lea.sflag [#allocation3], %s273
        %s275 = sand.u32 %s169, 1
        %s276 = smul.addr %s275, 16
        %s277 = scalar_lea.vmem [#allocation2], %s276
        %s278 = smul.u32 16, %s20
        %p279 = scmp.lt.s32.totalorder %s278, 31
        %s280 = scalar_select %p279, %s278, 31
        %s281 = smul.addr %s280, 4
        %s282 = scalar_lea.vmem %s0, %s281
        %s283 = smul.u32 16, %s20
        %s284 = smul.u32 16, %s20
        %p285 = scmp.lt.s32.totalorder %s284, 31
        %s286 = scalar_select %p285, %s284, 31
        %s287 = smul.addr %s286, 4
        %s288 = scalar_lea.vmem %s1, %s287
        %s289 = smul.u32 16, %s20
        %s290 = smul.u32 2, %s20
        %p291 = scmp.lt.s32.totalorder %s290, 3
        %s292 = scalar_select %p291, %s290, 3
        %s293 = smul.addr %s292, 4
        %s294 = scalar_lea.vmem %s2, %s293
        %s295 = smul.u32 2, %s20
        %s296 = smul.u32 2, %s20
        %v298 = vld [vmem:[%s3] sm:$0xf]
        %v299 = vld [vmem:[%s3 + $0x4] sm:$0xf]
        %v300 = vld [vmem:[%s3 + $0x8] sm:$0xf]
        %v301 = vld [vmem:[%s3 + $0xc] sm:$0xf]
        %v302 = vld [vmem:[%s3 + $0x10] sm:$0xf]
        %v303 = vld [vmem:[%s3 + $0x14] sm:$0xf]
        %v304 = vld [vmem:[%s3 + $0x18] sm:$0xf]
        %v305 = vld [vmem:[%s3 + $0x1c] sm:$0xf]
        %v306 = vld [vmem:[%s3 + $0x20] sm:$0xf]
        %v307 = vld [vmem:[%s3 + $0x24] sm:$0xf]
        %v308 = vld [vmem:[%s3 + $0x28] sm:$0xf]
        %v309 = vld [vmem:[%s3 + $0x2c] sm:$0xf]
        %v310 = vld [vmem:[%s3 + $0x30] sm:$0xf]
        %v311 = vld [vmem:[%s3 + $0x34] sm:$0xf]
        %v312 = vld [vmem:[%s3 + $0x38] sm:$0xf]
        %v313 = vld [vmem:[%s3 + $0x3c] sm:$0xf]
        %s314 = scalar_lea.vmem %s3, 64
        %v315 = vld [vmem:[%s314] sm:$0xf]
        %v316 = vld [vmem:[%s314 + $0x4] sm:$0xf]
        %v317 = vld [vmem:[%s314 + $0x8] sm:$0xf]
        %v318 = vld [vmem:[%s314 + $0xc] sm:$0xf]
        %v319 = vld [vmem:[%s314 + $0x10] sm:$0xf]
        %v320 = vld [vmem:[%s314 + $0x14] sm:$0xf]
        %v321 = vld [vmem:[%s314 + $0x18] sm:$0xf]
        %v322 = vld [vmem:[%s314 + $0x1c] sm:$0xf]
        %v323 = vld [vmem:[%s314 + $0x20] sm:$0xf]
        %v324 = vld [vmem:[%s314 + $0x24] sm:$0xf]
        %v325 = vld [vmem:[%s314 + $0x28] sm:$0xf]
        %v326 = vld [vmem:[%s314 + $0x2c] sm:$0xf]
        %v327 = vld [vmem:[%s314 + $0x30] sm:$0xf]
        %v328 = vld [vmem:[%s314 + $0x34] sm:$0xf]
        %v329 = vld [vmem:[%s314 + $0x38] sm:$0xf]
        %v330 = vld [vmem:[%s314 + $0x3c] sm:$0xf]
        %v331 = vld [vmem:[%s4] sm:$0xf]
        %v332 = vld [vmem:[%s4 + $0x4] sm:$0xf]
        %v333 = vld [vmem:[%s4 + $0x8] sm:$0xf]
        %v334 = vld [vmem:[%s4 + $0xc] sm:$0xf]
        %v335 = vld [vmem:[%s4 + $0x10] sm:$0xf]
        %v336 = vld [vmem:[%s4 + $0x14] sm:$0xf]
        %v337 = vld [vmem:[%s4 + $0x18] sm:$0xf]
        %v338 = vld [vmem:[%s4 + $0x1c] sm:$0xf]
        %s339 = scalar_lea.vmem %s4, 32
        %v340 = vld [vmem:[%s339] sm:$0xf]
        %v341 = vld [vmem:[%s339 + $0x4] sm:$0xf]
        %v342 = vld [vmem:[%s339 + $0x8] sm:$0xf]
        %v343 = vld [vmem:[%s339 + $0xc] sm:$0xf]
        %v344 = vld [vmem:[%s339 + $0x10] sm:$0xf]
        %v345 = vld [vmem:[%s339 + $0x14] sm:$0xf]
        %v346 = vld [vmem:[%s339 + $0x18] sm:$0xf]
        %v347 = vld [vmem:[%s339 + $0x1c] sm:$0xf]
        %v348 = vld [vmem:[%s5] sm:$0x1]
        %v349 = vld [vmem:[%s5 + $0x1] sm:$0x1]
        %v350 = vld [vmem:[%s5 + $0x2] sm:$0x1]
        %v351 = vld [vmem:[%s5 + $0x3] sm:$0x1]
        %v352 = vld [vmem:[%s5 + $0x4] sm:$0x1]
        %v353 = vld [vmem:[%s282] sm:$0xf]
        %v354 = vld [vmem:[%s282 + $0x4] sm:$0xf]
        %v355 = vld [vmem:[%s282 + $0x8] sm:$0xf]
        %v356 = vld [vmem:[%s282 + $0xc] sm:$0xf]
        %v357 = vld [vmem:[%s282 + $0x10] sm:$0xf]
        %v358 = vld [vmem:[%s282 + $0x14] sm:$0xf]
        %v359 = vld [vmem:[%s282 + $0x18] sm:$0xf]
        %v360 = vld [vmem:[%s282 + $0x1c] sm:$0xf]
        %v361 = vld [vmem:[%s282 + $0x20] sm:$0xf]
        %v362 = vld [vmem:[%s282 + $0x24] sm:$0xf]
        %v363 = vld [vmem:[%s282 + $0x28] sm:$0xf]
        %v364 = vld [vmem:[%s282 + $0x2c] sm:$0xf]
        %v365 = vld [vmem:[%s282 + $0x30] sm:$0xf]
        %v366 = vld [vmem:[%s282 + $0x34] sm:$0xf]
        %v367 = vld [vmem:[%s282 + $0x38] sm:$0xf]
        %v368 = vld [vmem:[%s282 + $0x3c] sm:$0xf]
        %v369 = vld [vmem:[%s288] sm:$0xf]
        %v370 = vld [vmem:[%s288 + $0x4] sm:$0xf]
        %v371 = vld [vmem:[%s288 + $0x8] sm:$0xf]
        %v372 = vld [vmem:[%s288 + $0xc] sm:$0xf]
        %v373 = vld [vmem:[%s288 + $0x10] sm:$0xf]
        %v374 = vld [vmem:[%s288 + $0x14] sm:$0xf]
        %v375 = vld [vmem:[%s288 + $0x18] sm:$0xf]
        %v376 = vld [vmem:[%s288 + $0x1c] sm:$0xf]
        %v377 = vld [vmem:[%s288 + $0x20] sm:$0xf]
        %v378 = vld [vmem:[%s288 + $0x24] sm:$0xf]
        %v379 = vld [vmem:[%s288 + $0x28] sm:$0xf]
        %v380 = vld [vmem:[%s288 + $0x2c] sm:$0xf]
        %v381 = vld [vmem:[%s288 + $0x30] sm:$0xf]
        %v382 = vld [vmem:[%s288 + $0x34] sm:$0xf]
        %v383 = vld [vmem:[%s288 + $0x38] sm:$0xf]
        %v384 = vld [vmem:[%s288 + $0x3c] sm:$0xf]
        %v385 = vld [vmem:[%s294] sm:$0xf]
        %v386 = vld [vmem:[%s294 + $0x4] sm:$0xf]
        %v403 = vunpack.c.l.b16 %v369
        %v404 = vunpack.c.l.b16 %v370
        %v405 = vunpack.c.l.b16 %v371
        %v406 = vunpack.c.l.b16 %v372
        %v407 = vunpack.c.l.b16 %v373
        %v408 = vunpack.c.l.b16 %v374
        %v409 = vunpack.c.l.b16 %v375
        %v410 = vunpack.c.l.b16 %v376
        %v411 = vunpack.c.l.b16 %v377
        %v412 = vunpack.c.l.b16 %v378
        %v413 = vunpack.c.l.b16 %v379
        %v414 = vunpack.c.l.b16 %v380
        %v415 = vunpack.c.l.b16 %v381
        %v416 = vunpack.c.l.b16 %v382
        %v417 = vunpack.c.l.b16 %v383
        %v418 = vunpack.c.l.b16 %v384
        %v419 = vpack.c.b16 %v404, %v403
        %v420 = vpack.c.b16 %v406, %v405
        %v421 = vpack.c.b16 %v408, %v407
        %v422 = vpack.c.b16 %v410, %v409
        %v423 = vpack.c.b16 %v412, %v411
        %v424 = vpack.c.b16 %v414, %v413
        %v425 = vpack.c.b16 %v416, %v415
        %v426 = vpack.c.b16 %v418, %v417
        %v435 = vunpack.c.l.b16 %v306
        %v436 = vunpack.c.l.b16 %v307
        %v437 = vunpack.c.l.b16 %v308
        %v438 = vunpack.c.l.b16 %v309
        %v439 = vunpack.c.l.b16 %v310
        %v440 = vunpack.c.l.b16 %v311
        %v441 = vunpack.c.l.b16 %v312
        %v442 = vunpack.c.l.b16 %v313
        %v443 = vpack.c.b16 %v436, %v435
        %v444 = vpack.c.b16 %v438, %v437
        %v445 = vpack.c.b16 %v440, %v439
        %v446 = vpack.c.b16 %v442, %v441
        %vm451 = vcmask 523264
        %v453 = vsel %vm451, %v419, 0
        %v456 = vsel %vm451, %v420, 0
        %v459 = vsel %vm451, %v421, 0
        %v462 = vsel %vm451, %v422, 0
        %v465 = vsel %vm451, %v423, 0
        %v468 = vsel %vm451, %v424, 0
        %v471 = vsel %vm451, %v425, 0
        %v474 = vsel %vm451, %v426, 0
        %476 = vmatpush.bf16.msra.mxu0 0
        %477 = vmatpush.bf16.msra.mxu0 0
        %478 = vmatpush.bf16.msra.mxu0 0
        %479 = vmatpush.bf16.msra.mxu0 0
        %480 = vmatpush.bf16.msra.mxu0 %v446
        %481 = vmatpush.bf16.msra.mxu0 %v445
        %482 = vmatpush.bf16.msra.mxu0 %v444
        %483 = vmatpush.bf16.msra.mxu0 %v443
        %484 = vmatmul.bf16.gmra.mxu0 %v453
        %v485 = vpop.f32.mrf.mxu0
        %v486 = vadd.f32 0.0, %v485
        %v487 = vpop.f32.mrf.mxu0
        %v488 = vadd.f32 0.0, %v487
        %489 = vmatmul.bf16.gmra.mxu0 %v456
        %v490 = vpop.f32.mrf.mxu0
        %v491 = vadd.f32 0.0, %v490
        %v492 = vpop.f32.mrf.mxu0
        %v493 = vadd.f32 0.0, %v492
        %494 = vmatmul.bf16.gmra.mxu0 %v459
        %v495 = vpop.f32.mrf.mxu0
        %v496 = vadd.f32 0.0, %v495
        %v497 = vpop.f32.mrf.mxu0
        %v498 = vadd.f32 0.0, %v497
        %499 = vmatmul.bf16.gmra.mxu0 %v462
        %v500 = vpop.f32.mrf.mxu0
        %v501 = vadd.f32 0.0, %v500
        %v502 = vpop.f32.mrf.mxu0
        %v503 = vadd.f32 0.0, %v502
        %504 = vmatmul.bf16.gmra.mxu0 %v465
        %v505 = vpop.f32.mrf.mxu0
        %v506 = vadd.f32 0.0, %v505
        %v507 = vpop.f32.mrf.mxu0
        %v508 = vadd.f32 0.0, %v507
        %509 = vmatmul.bf16.gmra.mxu0 %v468
        %v510 = vpop.f32.mrf.mxu0
        %v511 = vadd.f32 0.0, %v510
        %v512 = vpop.f32.mrf.mxu0
        %v513 = vadd.f32 0.0, %v512
        %514 = vmatmul.bf16.gmra.mxu0 %v471
        %v515 = vpop.f32.mrf.mxu0
        %v516 = vadd.f32 0.0, %v515
        %v517 = vpop.f32.mrf.mxu0
        %v518 = vadd.f32 0.0, %v517
        %519 = vmatmul.bf16.gmra.mxu0 %v474
        %v520 = vpop.f32.mrf.mxu0
        %v521 = vadd.f32 0.0, %v520
        %v522 = vpop.f32.mrf.mxu0
        %v523 = vadd.f32 0.0, %v522
        %524 = vdwg.mxu0
        %v541 = vunpack.c.l.b16 %v353
        %v542 = vunpack.c.l.b16 %v354
        %v543 = vunpack.c.l.b16 %v355
        %v544 = vunpack.c.l.b16 %v356
        %v545 = vunpack.c.l.b16 %v357
        %v546 = vunpack.c.l.b16 %v358
        %v547 = vunpack.c.l.b16 %v359
        %v548 = vunpack.c.l.b16 %v360
        %v549 = vunpack.c.l.b16 %v361
        %v550 = vunpack.c.l.b16 %v362
        %v551 = vunpack.c.l.b16 %v363
        %v552 = vunpack.c.l.b16 %v364
        %v553 = vunpack.c.l.b16 %v365
        %v554 = vunpack.c.l.b16 %v366
        %v555 = vunpack.c.l.b16 %v367
        %v556 = vunpack.c.l.b16 %v368
        %v557 = vpack.c.b16 %v542, %v541
        %v558 = vpack.c.b16 %v544, %v543
        %v559 = vpack.c.b16 %v546, %v545
        %v560 = vpack.c.b16 %v548, %v547
        %v561 = vpack.c.b16 %v550, %v549
        %v562 = vpack.c.b16 %v552, %v551
        %v563 = vpack.c.b16 %v554, %v553
        %v564 = vpack.c.b16 %v556, %v555
        %v573 = vunpack.c.l.b16 %v298
        %v574 = vunpack.c.l.b16 %v299
        %v575 = vunpack.c.l.b16 %v300
        %v576 = vunpack.c.l.b16 %v301
        %v577 = vunpack.c.l.b16 %v302
        %v578 = vunpack.c.l.b16 %v303
        %v579 = vunpack.c.l.b16 %v304
        %v580 = vunpack.c.l.b16 %v305
        %v581 = vpack.c.b16 %v574, %v573
        %v582 = vpack.c.b16 %v576, %v575
        %v583 = vpack.c.b16 %v578, %v577
        %v584 = vpack.c.b16 %v580, %v579
        %v590 = vsel %vm451, %v557, 0
        %v593 = vsel %vm451, %v558, 0
        %v596 = vsel %vm451, %v559, 0
        %v599 = vsel %vm451, %v560, 0
        %v602 = vsel %vm451, %v561, 0
        %v605 = vsel %vm451, %v562, 0
        %v608 = vsel %vm451, %v563, 0
        %v611 = vsel %vm451, %v564, 0
        %613 = vmatpush.bf16.msra.mxu0 0
        %614 = vmatpush.bf16.msra.mxu0 0
        %615 = vmatpush.bf16.msra.mxu0 0
        %616 = vmatpush.bf16.msra.mxu0 0
        %617 = vmatpush.bf16.msra.mxu0 %v584
        %618 = vmatpush.bf16.msra.mxu0 %v583
        %619 = vmatpush.bf16.msra.mxu0 %v582
        %620 = vmatpush.bf16.msra.mxu0 %v581
        %621 = vmatmul.bf16.gmra.mxu0 %v590
        %v622 = vpop.f32.mrf.mxu0
        %v623 = vadd.f32 %v486, %v622
        %v624 = vpop.f32.mrf.mxu0
        %v625 = vadd.f32 %v488, %v624
        %626 = vmatmul.bf16.gmra.mxu0 %v593
        %v627 = vpop.f32.mrf.mxu0
        %v628 = vadd.f32 %v491, %v627
        %v629 = vpop.f32.mrf.mxu0
        %v630 = vadd.f32 %v493, %v629
        %631 = vmatmul.bf16.gmra.mxu0 %v596
        %v632 = vpop.f32.mrf.mxu0
        %v633 = vadd.f32 %v496, %v632
        %v634 = vpop.f32.mrf.mxu0
        %v635 = vadd.f32 %v498, %v634
        %636 = vmatmul.bf16.gmra.mxu0 %v599
        %v637 = vpop.f32.mrf.mxu0
        %v638 = vadd.f32 %v501, %v637
        %v639 = vpop.f32.mrf.mxu0
        %v640 = vadd.f32 %v503, %v639
        %641 = vmatmul.bf16.gmra.mxu0 %v602
        %v642 = vpop.f32.mrf.mxu0
        %v643 = vadd.f32 %v506, %v642
        %v644 = vpop.f32.mrf.mxu0
        %v645 = vadd.f32 %v508, %v644
        %646 = vmatmul.bf16.gmra.mxu0 %v605
        %v647 = vpop.f32.mrf.mxu0
        %v648 = vadd.f32 %v511, %v647
        %v649 = vpop.f32.mrf.mxu0
        %v650 = vadd.f32 %v513, %v649
        %651 = vmatmul.bf16.gmra.mxu0 %v608
        %v652 = vpop.f32.mrf.mxu0
        %v653 = vadd.f32 %v516, %v652
        %v654 = vpop.f32.mrf.mxu0
        %v655 = vadd.f32 %v518, %v654
        %656 = vmatmul.bf16.gmra.mxu0 %v611
        %v657 = vpop.f32.mrf.mxu0
        %v658 = vadd.f32 %v521, %v657
        %v659 = vpop.f32.mrf.mxu0
        %v660 = vadd.f32 %v523, %v659
        %661 = vdwg.mxu0
        %v662 = vperm.slane %v348, 0
        %v663 = vadd.f32 %v623, %v662
        %v664 = vadd.f32 %v625, %v662
        %v665 = vadd.f32 %v628, %v662
        %v666 = vadd.f32 %v630, %v662
        %v667 = vadd.f32 %v633, %v662
        %v668 = vadd.f32 %v635, %v662
        %v669 = vadd.f32 %v638, %v662
        %v670 = vadd.f32 %v640, %v662
        %v671 = vadd.f32 %v643, %v662
        %v672 = vadd.f32 %v645, %v662
        %v673 = vadd.f32 %v648, %v662
        %v674 = vadd.f32 %v650, %v662
        %v675 = vadd.f32 %v653, %v662
        %v676 = vadd.f32 %v655, %v662
        %v677 = vadd.f32 %v658, %v662
        %v678 = vadd.f32 %v660, %v662
        %v679 = vmax.f32 %v663, 0.0
        %v680 = vmax.f32 %v664, 0.0
        %v681 = vmax.f32 %v665, 0.0
        %v682 = vmax.f32 %v666, 0.0
        %v683 = vmax.f32 %v667, 0.0
        %v684 = vmax.f32 %v668, 0.0
        %v685 = vmax.f32 %v669, 0.0
        %v686 = vmax.f32 %v670, 0.0
        %v687 = vmax.f32 %v671, 0.0
        %v688 = vmax.f32 %v672, 0.0
        %v689 = vmax.f32 %v673, 0.0
        %v690 = vmax.f32 %v674, 0.0
        %v691 = vmax.f32 %v675, 0.0
        %v692 = vmax.f32 %v676, 0.0
        %v693 = vmax.f32 %v677, 0.0
        %v694 = vmax.f32 %v678, 0.0
        %v695 = vpack.c.bf16 %v680, %v679
        %v696 = vpack.c.bf16 %v682, %v681
        %v697 = vpack.c.bf16 %v684, %v683
        %v698 = vpack.c.bf16 %v686, %v685
        %v699 = vpack.c.bf16 %v688, %v687
        %v700 = vpack.c.bf16 %v690, %v689
        %v701 = vpack.c.bf16 %v692, %v691
        %v702 = vpack.c.bf16 %v694, %v693
        %v703 = vperm.slane %v349, 0
        %v712 = vunpack.c.l.b16 %v331
        %v713 = vunpack.c.l.b16 %v332
        %v714 = vunpack.c.l.b16 %v333
        %v715 = vunpack.c.l.b16 %v334
        %v716 = vunpack.c.l.b16 %v335
        %v717 = vunpack.c.l.b16 %v336
        %v718 = vunpack.c.l.b16 %v337
        %v719 = vunpack.c.l.b16 %v338
        %v720 = vpack.c.b16 %v713, %v712
        %v721 = vpack.c.b16 %v715, %v714
        %v722 = vpack.c.b16 %v717, %v716
        %v723 = vpack.c.b16 %v719, %v718
        %v729 = vsel %vm451, %v695, 0
        %v732 = vsel %vm451, %v696, 0
        %v735 = vsel %vm451, %v697, 0
        %v738 = vsel %vm451, %v698, 0
        %v741 = vsel %vm451, %v699, 0
        %v744 = vsel %vm451, %v700, 0
        %v747 = vsel %vm451, %v701, 0
        %v750 = vsel %vm451, %v702, 0
        %752 = vmatpush.bf16.msra.mxu0 0
        %753 = vmatpush.bf16.msra.mxu0 0
        %754 = vmatpush.bf16.msra.mxu0 0
        %755 = vmatpush.bf16.msra.mxu0 0
        %756 = vmatpush.bf16.msra.mxu0 %v723
        %757 = vmatpush.bf16.msra.mxu0 %v722
        %758 = vmatpush.bf16.msra.mxu0 %v721
        %759 = vmatpush.bf16.msra.mxu0 %v720
        %760 = vmatmul.bf16.gmra.mxu0 %v729
        %v761 = vpop.f32.mrf.mxu0
        %v762 = vadd.f32 %v703, %v761
        %v763 = vpop.f32.mrf.mxu0
        %v764 = vadd.f32 %v703, %v763
        %765 = vmatmul.bf16.gmra.mxu0 %v732
        %v766 = vpop.f32.mrf.mxu0
        %v767 = vadd.f32 %v703, %v766
        %v768 = vpop.f32.mrf.mxu0
        %v769 = vadd.f32 %v703, %v768
        %770 = vmatmul.bf16.gmra.mxu0 %v735
        %v771 = vpop.f32.mrf.mxu0
        %v772 = vadd.f32 %v703, %v771
        %v773 = vpop.f32.mrf.mxu0
        %v774 = vadd.f32 %v703, %v773
        %775 = vmatmul.bf16.gmra.mxu0 %v738
        %v776 = vpop.f32.mrf.mxu0
        %v777 = vadd.f32 %v703, %v776
        %v778 = vpop.f32.mrf.mxu0
        %v779 = vadd.f32 %v703, %v778
        %780 = vmatmul.bf16.gmra.mxu0 %v741
        %v781 = vpop.f32.mrf.mxu0
        %v782 = vadd.f32 %v703, %v781
        %v783 = vpop.f32.mrf.mxu0
        %v784 = vadd.f32 %v703, %v783
        %785 = vmatmul.bf16.gmra.mxu0 %v744
        %v786 = vpop.f32.mrf.mxu0
        %v787 = vadd.f32 %v703, %v786
        %v788 = vpop.f32.mrf.mxu0
        %v789 = vadd.f32 %v703, %v788
        %790 = vmatmul.bf16.gmra.mxu0 %v747
        %v791 = vpop.f32.mrf.mxu0
        %v792 = vadd.f32 %v703, %v791
        %v793 = vpop.f32.mrf.mxu0
        %v794 = vadd.f32 %v703, %v793
        %795 = vmatmul.bf16.gmra.mxu0 %v750
        %v796 = vpop.f32.mrf.mxu0
        %v797 = vadd.f32 %v703, %v796
        %v798 = vpop.f32.mrf.mxu0
        %v799 = vadd.f32 %v703, %v798
        %800 = vdwg.mxu0
        %v801 = vmax.f32 %v762, 0.0
        %v802 = vmax.f32 %v764, 0.0
        %v803 = vmax.f32 %v767, 0.0
        %v804 = vmax.f32 %v769, 0.0
        %v805 = vmax.f32 %v772, 0.0
        %v806 = vmax.f32 %v774, 0.0
        %v807 = vmax.f32 %v777, 0.0
        %v808 = vmax.f32 %v779, 0.0
        %v809 = vmax.f32 %v782, 0.0
        %v810 = vmax.f32 %v784, 0.0
        %v811 = vmax.f32 %v787, 0.0
        %v812 = vmax.f32 %v789, 0.0
        %v813 = vmax.f32 %v792, 0.0
        %v814 = vmax.f32 %v794, 0.0
        %v815 = vmax.f32 %v797, 0.0
        %v816 = vmax.f32 %v799, 0.0
        %v817 = vpack.c.bf16 %v802, %v801
        %v818 = vpack.c.bf16 %v804, %v803
        %v819 = vpack.c.bf16 %v806, %v805
        %v820 = vpack.c.bf16 %v808, %v807
        %v821 = vpack.c.bf16 %v810, %v809
        %v822 = vpack.c.bf16 %v812, %v811
        %v823 = vpack.c.bf16 %v814, %v813
        %v824 = vpack.c.bf16 %v816, %v815
        %v833 = vunpack.c.l.b16 %v315
        %v834 = vunpack.c.l.b16 %v316
        %v835 = vunpack.c.l.b16 %v317
        %v836 = vunpack.c.l.b16 %v318
        %v837 = vunpack.c.l.b16 %v319
        %v838 = vunpack.c.l.b16 %v320
        %v839 = vunpack.c.l.b16 %v321
        %v840 = vunpack.c.l.b16 %v322
        %v841 = vpack.c.b16 %v834, %v833
        %v842 = vpack.c.b16 %v836, %v835
        %v843 = vpack.c.b16 %v838, %v837
        %v844 = vpack.c.b16 %v840, %v839
        %v850 = vsel %vm451, %v817, 0
        %v853 = vsel %vm451, %v818, 0
        %v856 = vsel %vm451, %v819, 0
        %v859 = vsel %vm451, %v820, 0
        %v862 = vsel %vm451, %v821, 0
        %v865 = vsel %vm451, %v822, 0
        %v868 = vsel %vm451, %v823, 0
        %v871 = vsel %vm451, %v824, 0
        %873 = vmatpush.bf16.msra.mxu0 0
        %874 = vmatpush.bf16.msra.mxu0 0
        %875 = vmatpush.bf16.msra.mxu0 0
        %876 = vmatpush.bf16.msra.mxu0 0
        %877 = vmatpush.bf16.msra.mxu0 %v844
        %878 = vmatpush.bf16.msra.mxu0 %v843
        %879 = vmatpush.bf16.msra.mxu0 %v842
        %880 = vmatpush.bf16.msra.mxu0 %v841
        %881 = vmatmul.bf16.gmra.mxu0 %v850
        %v882 = vpop.f32.mrf.mxu0
        %v883 = vadd.f32 0.0, %v882
        %v884 = vpop.f32.mrf.mxu0
        %v885 = vadd.f32 0.0, %v884
        %886 = vmatmul.bf16.gmra.mxu0 %v853
        %v887 = vpop.f32.mrf.mxu0
        %v888 = vadd.f32 0.0, %v887
        %v889 = vpop.f32.mrf.mxu0
        %v890 = vadd.f32 0.0, %v889
        %891 = vmatmul.bf16.gmra.mxu0 %v856
        %v892 = vpop.f32.mrf.mxu0
        %v893 = vadd.f32 0.0, %v892
        %v894 = vpop.f32.mrf.mxu0
        %v895 = vadd.f32 0.0, %v894
        %896 = vmatmul.bf16.gmra.mxu0 %v859
        %v897 = vpop.f32.mrf.mxu0
        %v898 = vadd.f32 0.0, %v897
        %v899 = vpop.f32.mrf.mxu0
        %v900 = vadd.f32 0.0, %v899
        %901 = vmatmul.bf16.gmra.mxu0 %v862
        %v902 = vpop.f32.mrf.mxu0
        %v903 = vadd.f32 0.0, %v902
        %v904 = vpop.f32.mrf.mxu0
        %v905 = vadd.f32 0.0, %v904
        %906 = vmatmul.bf16.gmra.mxu0 %v865
        %v907 = vpop.f32.mrf.mxu0
        %v908 = vadd.f32 0.0, %v907
        %v909 = vpop.f32.mrf.mxu0
        %v910 = vadd.f32 0.0, %v909
        %911 = vmatmul.bf16.gmra.mxu0 %v868
        %v912 = vpop.f32.mrf.mxu0
        %v913 = vadd.f32 0.0, %v912
        %v914 = vpop.f32.mrf.mxu0
        %v915 = vadd.f32 0.0, %v914
        %916 = vmatmul.bf16.gmra.mxu0 %v871
        %v917 = vpop.f32.mrf.mxu0
        %v918 = vadd.f32 0.0, %v917
        %v919 = vpop.f32.mrf.mxu0
        %v920 = vadd.f32 0.0, %v919
        %921 = vdwg.mxu0
        %v924 = vunpack.c.l.b16 %v385
        %v925 = vunpack.c.l.b16 %v386
        %v926 = vpack.c.b16 %v925, %v924
        %v935 = vunpack.c.l.b16 %v323
        %v936 = vunpack.c.l.b16 %v324
        %v937 = vunpack.c.l.b16 %v325
        %v938 = vunpack.c.l.b16 %v326
        %v939 = vunpack.c.l.b16 %v327
        %v940 = vunpack.c.l.b16 %v328
        %v941 = vunpack.c.l.b16 %v329
        %v942 = vunpack.c.l.b16 %v330
        %v943 = vpack.c.b16 %v936, %v935
        %v944 = vpack.c.b16 %v938, %v937
        %v945 = vpack.c.b16 %v940, %v939
        %v946 = vpack.c.b16 %v942, %v941
        %v952 = vsel %vm451, %v926, 0
        %954 = vmatpush.bf16.msra.mxu0 0
        %955 = vmatpush.bf16.msra.mxu0 0
        %956 = vmatpush.bf16.msra.mxu0 0
        %957 = vmatpush.bf16.msra.mxu0 0
        %958 = vmatpush.bf16.msra.mxu0 %v946
        %959 = vmatpush.bf16.msra.mxu0 %v945
        %960 = vmatpush.bf16.msra.mxu0 %v944
        %961 = vmatpush.bf16.msra.mxu0 %v943
        %962 = vmatmul.bf16.gmra.mxu0 %v952
        %v963 = vpop.f32.mrf.mxu0
        %v964 = vadd.f32 0.0, %v963
        %v965 = vpop.f32.mrf.mxu0
        %v966 = vadd.f32 0.0, %v965
        %967 = vdwg.mxu0
        %v970 = vrot.slane %v964, 1
        %v971 = vrot.slane %v964, 2
        %v972 = vrot.slane %v964, 3
        %v973 = vrot.slane %v964, 4
        %v974 = vrot.slane %v964, 5
        %v975 = vrot.slane %v964, 6
        %v976 = vrot.slane %v964, 7
        %v977 = vrot.slane %v966, 1
        %v978 = vrot.slane %v966, 2
        %v979 = vrot.slane %v966, 3
        %v980 = vrot.slane %v966, 4
        %v981 = vrot.slane %v966, 5
        %v982 = vrot.slane %v966, 6
        %v983 = vrot.slane %v966, 7
        %v984 = vperm.slane %v964, 0
        %v985 = vperm.slane %v970, 0
        %v986 = vperm.slane %v971, 0
        %v987 = vperm.slane %v972, 0
        %v988 = vperm.slane %v973, 0
        %v989 = vperm.slane %v974, 0
        %v990 = vperm.slane %v975, 0
        %v991 = vperm.slane %v976, 0
        %v992 = vperm.slane %v966, 0
        %v993 = vperm.slane %v977, 0
        %v994 = vperm.slane %v978, 0
        %v995 = vperm.slane %v979, 0
        %v996 = vperm.slane %v980, 0
        %v997 = vperm.slane %v981, 0
        %v998 = vperm.slane %v982, 0
        %v999 = vperm.slane %v983, 0
        %v1016 = vadd.f32 %v883, %v984
        %v1017 = vadd.f32 %v885, %v985
        %v1018 = vadd.f32 %v888, %v986
        %v1019 = vadd.f32 %v890, %v987
        %v1020 = vadd.f32 %v893, %v988
        %v1021 = vadd.f32 %v895, %v989
        %v1022 = vadd.f32 %v898, %v990
        %v1023 = vadd.f32 %v900, %v991
        %v1024 = vadd.f32 %v903, %v992
        %v1025 = vadd.f32 %v905, %v993
        %v1026 = vadd.f32 %v908, %v994
        %v1027 = vadd.f32 %v910, %v995
        %v1028 = vadd.f32 %v913, %v996
        %v1029 = vadd.f32 %v915, %v997
        %v1030 = vadd.f32 %v918, %v998
        %v1031 = vadd.f32 %v920, %v999
        %v1032 = vperm.slane %v350, 0
        %v1033 = vadd.f32 %v1016, %v1032
        %v1034 = vadd.f32 %v1017, %v1032
        %v1035 = vadd.f32 %v1018, %v1032
        %v1036 = vadd.f32 %v1019, %v1032
        %v1037 = vadd.f32 %v1020, %v1032
        %v1038 = vadd.f32 %v1021, %v1032
        %v1039 = vadd.f32 %v1022, %v1032
        %v1040 = vadd.f32 %v1023, %v1032
        %v1041 = vadd.f32 %v1024, %v1032
        %v1042 = vadd.f32 %v1025, %v1032
        %v1043 = vadd.f32 %v1026, %v1032
        %v1044 = vadd.f32 %v1027, %v1032
        %v1045 = vadd.f32 %v1028, %v1032
        %v1046 = vadd.f32 %v1029, %v1032
        %v1047 = vadd.f32 %v1030, %v1032
        %v1048 = vadd.f32 %v1031, %v1032
        %v1049 = vmax.f32 %v1033, 0.0
        %v1050 = vmax.f32 %v1034, 0.0
        %v1051 = vmax.f32 %v1035, 0.0
        %v1052 = vmax.f32 %v1036, 0.0
        %v1053 = vmax.f32 %v1037, 0.0
        %v1054 = vmax.f32 %v1038, 0.0
        %v1055 = vmax.f32 %v1039, 0.0
        %v1056 = vmax.f32 %v1040, 0.0
        %v1057 = vmax.f32 %v1041, 0.0
        %v1058 = vmax.f32 %v1042, 0.0
        %v1059 = vmax.f32 %v1043, 0.0
        %v1060 = vmax.f32 %v1044, 0.0
        %v1061 = vmax.f32 %v1045, 0.0
        %v1062 = vmax.f32 %v1046, 0.0
        %v1063 = vmax.f32 %v1047, 0.0
        %v1064 = vmax.f32 %v1048, 0.0
        %v1065 = vpack.c.bf16 %v1050, %v1049
        %v1066 = vpack.c.bf16 %v1052, %v1051
        %v1067 = vpack.c.bf16 %v1054, %v1053
        %v1068 = vpack.c.bf16 %v1056, %v1055
        %v1069 = vpack.c.bf16 %v1058, %v1057
        %v1070 = vpack.c.bf16 %v1060, %v1059
        %v1071 = vpack.c.bf16 %v1062, %v1061
        %v1072 = vpack.c.bf16 %v1064, %v1063
        %v1073 = vperm.slane %v351, 0
        %v1082 = vunpack.c.l.b16 %v340
        %v1083 = vunpack.c.l.b16 %v341
        %v1084 = vunpack.c.l.b16 %v342
        %v1085 = vunpack.c.l.b16 %v343
        %v1086 = vunpack.c.l.b16 %v344
        %v1087 = vunpack.c.l.b16 %v345
        %v1088 = vunpack.c.l.b16 %v346
        %v1089 = vunpack.c.l.b16 %v347
        %v1090 = vpack.c.b16 %v1083, %v1082
        %v1091 = vpack.c.b16 %v1085, %v1084
        %v1092 = vpack.c.b16 %v1087, %v1086
        %v1093 = vpack.c.b16 %v1089, %v1088
        %v1099 = vsel %vm451, %v1065, 0
        %v1102 = vsel %vm451, %v1066, 0
        %v1105 = vsel %vm451, %v1067, 0
        %v1108 = vsel %vm451, %v1068, 0
        %v1111 = vsel %vm451, %v1069, 0
        %v1114 = vsel %vm451, %v1070, 0
        %v1117 = vsel %vm451, %v1071, 0
        %v1120 = vsel %vm451, %v1072, 0
        %1122 = vmatpush.bf16.msra.mxu0 0
        %1123 = vmatpush.bf16.msra.mxu0 0
        %1124 = vmatpush.bf16.msra.mxu0 0
        %1125 = vmatpush.bf16.msra.mxu0 0
        %1126 = vmatpush.bf16.msra.mxu0 %v1093
        %1127 = vmatpush.bf16.msra.mxu0 %v1092
        %1128 = vmatpush.bf16.msra.mxu0 %v1091
        %1129 = vmatpush.bf16.msra.mxu0 %v1090
        %1130 = vmatmul.bf16.gmra.mxu0 %v1099
        %v1131 = vpop.f32.mrf.mxu0
        %v1132 = vadd.f32 %v1073, %v1131
        %v1133 = vpop.f32.mrf.mxu0
        %v1134 = vadd.f32 %v1073, %v1133
        %1135 = vmatmul.bf16.gmra.mxu0 %v1102
        %v1136 = vpop.f32.mrf.mxu0
        %v1137 = vadd.f32 %v1073, %v1136
        %v1138 = vpop.f32.mrf.mxu0
        %v1139 = vadd.f32 %v1073, %v1138
        %1140 = vmatmul.bf16.gmra.mxu0 %v1105
        %v1141 = vpop.f32.mrf.mxu0
        %v1142 = vadd.f32 %v1073, %v1141
        %v1143 = vpop.f32.mrf.mxu0
        %v1144 = vadd.f32 %v1073, %v1143
        %1145 = vmatmul.bf16.gmra.mxu0 %v1108
        %v1146 = vpop.f32.mrf.mxu0
        %v1147 = vadd.f32 %v1073, %v1146
        %v1148 = vpop.f32.mrf.mxu0
        %v1149 = vadd.f32 %v1073, %v1148
        %1150 = vmatmul.bf16.gmra.mxu0 %v1111
        %v1151 = vpop.f32.mrf.mxu0
        %v1152 = vadd.f32 %v1073, %v1151
        %v1153 = vpop.f32.mrf.mxu0
        %v1154 = vadd.f32 %v1073, %v1153
        %1155 = vmatmul.bf16.gmra.mxu0 %v1114
        %v1156 = vpop.f32.mrf.mxu0
        %v1157 = vadd.f32 %v1073, %v1156
        %v1158 = vpop.f32.mrf.mxu0
        %v1159 = vadd.f32 %v1073, %v1158
        %1160 = vmatmul.bf16.gmra.mxu0 %v1117
        %v1161 = vpop.f32.mrf.mxu0
        %v1162 = vadd.f32 %v1073, %v1161
        %v1163 = vpop.f32.mrf.mxu0
        %v1164 = vadd.f32 %v1073, %v1163
        %1165 = vmatmul.bf16.gmra.mxu0 %v1120
        %v1166 = vpop.f32.mrf.mxu0
        %v1167 = vadd.f32 %v1073, %v1166
        %v1168 = vpop.f32.mrf.mxu0
        %v1169 = vadd.f32 %v1073, %v1168
        %1170 = vdwg.mxu0
        %v1171 = vmax.f32 %v1132, 0.0
        %v1172 = vmax.f32 %v1134, 0.0
        %v1173 = vmax.f32 %v1137, 0.0
        %v1174 = vmax.f32 %v1139, 0.0
        %v1175 = vmax.f32 %v1142, 0.0
        %v1176 = vmax.f32 %v1144, 0.0
        %v1177 = vmax.f32 %v1147, 0.0
        %v1178 = vmax.f32 %v1149, 0.0
        %v1179 = vmax.f32 %v1152, 0.0
        %v1180 = vmax.f32 %v1154, 0.0
        %v1181 = vmax.f32 %v1157, 0.0
        %v1182 = vmax.f32 %v1159, 0.0
        %v1183 = vmax.f32 %v1162, 0.0
        %v1184 = vmax.f32 %v1164, 0.0
        %v1185 = vmax.f32 %v1167, 0.0
        %v1186 = vmax.f32 %v1169, 0.0
        %v1187 = vperm.slane %v352, 0
        %v1188 = vmul.f32 %v1171, %v1187
        %v1189 = vmul.f32 %v1172, %v1187
        %v1190 = vmul.f32 %v1173, %v1187
        %v1191 = vmul.f32 %v1174, %v1187
        %v1192 = vmul.f32 %v1175, %v1187
        %v1193 = vmul.f32 %v1176, %v1187
        %v1194 = vmul.f32 %v1177, %v1187
        %v1195 = vmul.f32 %v1178, %v1187
        %v1196 = vmul.f32 %v1179, %v1187
        %v1197 = vmul.f32 %v1180, %v1187
        %v1198 = vmul.f32 %v1181, %v1187
        %v1199 = vmul.f32 %v1182, %v1187
        %v1200 = vmul.f32 %v1183, %v1187
        %v1201 = vmul.f32 %v1184, %v1187
        %v1202 = vmul.f32 %v1185, %v1187
        %v1203 = vmul.f32 %v1186, %v1187
        %v1204 = vsel %vm451, %v1188, 0.0
        %1205 = vadd.xlane.f32.xlu0 %v1204
        %v1206 = vpop.xlane.xlu0 %1205
        %v1207 = vsel %vm451, %v1189, 0.0
        %1208 = vadd.xlane.f32.xlu0 %v1207
        %v1209 = vpop.xlane.xlu0 %1208
        %v1210 = vsel %vm451, %v1190, 0.0
        %1211 = vadd.xlane.f32.xlu0 %v1210
        %v1212 = vpop.xlane.xlu0 %1211
        %v1213 = vsel %vm451, %v1191, 0.0
        %1214 = vadd.xlane.f32.xlu0 %v1213
        %v1215 = vpop.xlane.xlu0 %1214
        %v1216 = vsel %vm451, %v1192, 0.0
        %1217 = vadd.xlane.f32.xlu0 %v1216
        %v1218 = vpop.xlane.xlu0 %1217
        %v1219 = vsel %vm451, %v1193, 0.0
        %1220 = vadd.xlane.f32.xlu0 %v1219
        %v1221 = vpop.xlane.xlu0 %1220
        %v1222 = vsel %vm451, %v1194, 0.0
        %1223 = vadd.xlane.f32.xlu0 %v1222
        %v1224 = vpop.xlane.xlu0 %1223
        %v1225 = vsel %vm451, %v1195, 0.0
        %1226 = vadd.xlane.f32.xlu0 %v1225
        %v1227 = vpop.xlane.xlu0 %1226
        %v1228 = vsel %vm451, %v1196, 0.0
        %1229 = vadd.xlane.f32.xlu0 %v1228
        %v1230 = vpop.xlane.xlu0 %1229
        %v1231 = vsel %vm451, %v1197, 0.0
        %1232 = vadd.xlane.f32.xlu0 %v1231
        %v1233 = vpop.xlane.xlu0 %1232
        %v1234 = vsel %vm451, %v1198, 0.0
        %1235 = vadd.xlane.f32.xlu0 %v1234
        %v1236 = vpop.xlane.xlu0 %1235
        %v1237 = vsel %vm451, %v1199, 0.0
        %1238 = vadd.xlane.f32.xlu0 %v1237
        %v1239 = vpop.xlane.xlu0 %1238
        %v1240 = vsel %vm451, %v1200, 0.0
        %1241 = vadd.xlane.f32.xlu0 %v1240
        %v1242 = vpop.xlane.xlu0 %1241
        %v1243 = vsel %vm451, %v1201, 0.0
        %1244 = vadd.xlane.f32.xlu0 %v1243
        %v1245 = vpop.xlane.xlu0 %1244
        %v1246 = vsel %vm451, %v1202, 0.0
        %1247 = vadd.xlane.f32.xlu0 %v1246
        %v1248 = vpop.xlane.xlu0 %1247
        %v1249 = vsel %vm451, %v1203, 0.0
        %1250 = vadd.xlane.f32.xlu0 %v1249
        %v1251 = vpop.xlane.xlu0 %1250
        %v1252 = vrot.slane %v1206, 4
        %v1253 = vmax.f32 %v1206, %v1252
        %v1254 = vrot.slane %v1253, 2
        %v1255 = vmax.f32 %v1253, %v1254
        %v1256 = vrot.slane %v1255, 1
        %v1257 = vmax.f32 %v1255, %v1256
        %v1258 = vrot.slane %v1209, 4
        %v1259 = vmax.f32 %v1209, %v1258
        %v1260 = vrot.slane %v1259, 2
        %v1261 = vmax.f32 %v1259, %v1260
        %v1262 = vrot.slane %v1261, 1
        %v1263 = vmax.f32 %v1261, %v1262
        %v1264 = vrot.slane %v1212, 4
        %v1265 = vmax.f32 %v1212, %v1264
        %v1266 = vrot.slane %v1265, 2
        %v1267 = vmax.f32 %v1265, %v1266
        %v1268 = vrot.slane %v1267, 1
        %v1269 = vmax.f32 %v1267, %v1268
        %v1270 = vrot.slane %v1215, 4
        %v1271 = vmax.f32 %v1215, %v1270
        %v1272 = vrot.slane %v1271, 2
        %v1273 = vmax.f32 %v1271, %v1272
        %v1274 = vrot.slane %v1273, 1
        %v1275 = vmax.f32 %v1273, %v1274
        %v1276 = vrot.slane %v1218, 4
        %v1277 = vmax.f32 %v1218, %v1276
        %v1278 = vrot.slane %v1277, 2
        %v1279 = vmax.f32 %v1277, %v1278
        %v1280 = vrot.slane %v1279, 1
        %v1281 = vmax.f32 %v1279, %v1280
        %v1282 = vrot.slane %v1221, 4
        %v1283 = vmax.f32 %v1221, %v1282
        %v1284 = vrot.slane %v1283, 2
        %v1285 = vmax.f32 %v1283, %v1284
        %v1286 = vrot.slane %v1285, 1
        %v1287 = vmax.f32 %v1285, %v1286
        %v1288 = vrot.slane %v1224, 4
        %v1289 = vmax.f32 %v1224, %v1288
        %v1290 = vrot.slane %v1289, 2
        %v1291 = vmax.f32 %v1289, %v1290
        %v1292 = vrot.slane %v1291, 1
        %v1293 = vmax.f32 %v1291, %v1292
        %v1294 = vrot.slane %v1227, 4
        %v1295 = vmax.f32 %v1227, %v1294
        %v1296 = vrot.slane %v1295, 2
        %v1297 = vmax.f32 %v1295, %v1296
        %v1298 = vrot.slane %v1297, 1
        %v1299 = vmax.f32 %v1297, %v1298
        %v1300 = vrot.slane %v1230, 4
        %v1301 = vmax.f32 %v1230, %v1300
        %v1302 = vrot.slane %v1301, 2
        %v1303 = vmax.f32 %v1301, %v1302
        %v1304 = vrot.slane %v1303, 1
        %v1305 = vmax.f32 %v1303, %v1304
        %v1306 = vrot.slane %v1233, 4
        %v1307 = vmax.f32 %v1233, %v1306
        %v1308 = vrot.slane %v1307, 2
        %v1309 = vmax.f32 %v1307, %v1308
        %v1310 = vrot.slane %v1309, 1
        %v1311 = vmax.f32 %v1309, %v1310
        %v1312 = vrot.slane %v1236, 4
        %v1313 = vmax.f32 %v1236, %v1312
        %v1314 = vrot.slane %v1313, 2
        %v1315 = vmax.f32 %v1313, %v1314
        %v1316 = vrot.slane %v1315, 1
        %v1317 = vmax.f32 %v1315, %v1316
        %v1318 = vrot.slane %v1239, 4
        %v1319 = vmax.f32 %v1239, %v1318
        %v1320 = vrot.slane %v1319, 2
        %v1321 = vmax.f32 %v1319, %v1320
        %v1322 = vrot.slane %v1321, 1
        %v1323 = vmax.f32 %v1321, %v1322
        %v1324 = vrot.slane %v1242, 4
        %v1325 = vmax.f32 %v1242, %v1324
        %v1326 = vrot.slane %v1325, 2
        %v1327 = vmax.f32 %v1325, %v1326
        %v1328 = vrot.slane %v1327, 1
        %v1329 = vmax.f32 %v1327, %v1328
        %v1330 = vrot.slane %v1245, 4
        %v1331 = vmax.f32 %v1245, %v1330
        %v1332 = vrot.slane %v1331, 2
        %v1333 = vmax.f32 %v1331, %v1332
        %v1334 = vrot.slane %v1333, 1
        %v1335 = vmax.f32 %v1333, %v1334
        %v1336 = vrot.slane %v1248, 4
        %v1337 = vmax.f32 %v1248, %v1336
        %v1338 = vrot.slane %v1337, 2
        %v1339 = vmax.f32 %v1337, %v1338
        %v1340 = vrot.slane %v1339, 1
        %v1341 = vmax.f32 %v1339, %v1340
        %v1342 = vrot.slane %v1251, 4
        %v1343 = vmax.f32 %v1251, %v1342
        %v1344 = vrot.slane %v1343, 2
        %v1345 = vmax.f32 %v1343, %v1344
        %v1346 = vrot.slane %v1345, 1
        %v1347 = vmax.f32 %v1345, %v1346
        %v1348 = vsub.f32 %v1206, %v1257
        %v1349 = vsub.f32 %v1209, %v1263
        %v1350 = vsub.f32 %v1212, %v1269
        %v1351 = vsub.f32 %v1215, %v1275
        %v1352 = vsub.f32 %v1218, %v1281
        %v1353 = vsub.f32 %v1221, %v1287
        %v1354 = vsub.f32 %v1224, %v1293
        %v1355 = vsub.f32 %v1227, %v1299
        %v1356 = vsub.f32 %v1230, %v1305
        %v1357 = vsub.f32 %v1233, %v1311
        %v1358 = vsub.f32 %v1236, %v1317
        %v1359 = vsub.f32 %v1239, %v1323
        %v1360 = vsub.f32 %v1242, %v1329
        %v1361 = vsub.f32 %v1245, %v1335
        %v1362 = vsub.f32 %v1248, %v1341
        %v1363 = vsub.f32 %v1251, %v1347
        %v1364 = vmul.f32 %v1348, 1.442695
        %v1365 = vpow.pop %v1364
        %v1366 = vmul.f32 %v1349, 1.442695
        %v1367 = vpow.pop %v1366
        %v1368 = vmul.f32 %v1350, 1.442695
        %v1369 = vpow.pop %v1368
        %v1370 = vmul.f32 %v1351, 1.442695
        %v1371 = vpow.pop %v1370
        %v1372 = vmul.f32 %v1352, 1.442695
        %v1373 = vpow.pop %v1372
        %v1374 = vmul.f32 %v1353, 1.442695
        %v1375 = vpow.pop %v1374
        %v1376 = vmul.f32 %v1354, 1.442695
        %v1377 = vpow.pop %v1376
        %v1378 = vmul.f32 %v1355, 1.442695
        %v1379 = vpow.pop %v1378
        %v1380 = vmul.f32 %v1356, 1.442695
        %v1381 = vpow.pop %v1380
        %v1382 = vmul.f32 %v1357, 1.442695
        %v1383 = vpow.pop %v1382
        %v1384 = vmul.f32 %v1358, 1.442695
        %v1385 = vpow.pop %v1384
        %v1386 = vmul.f32 %v1359, 1.442695
        %v1387 = vpow.pop %v1386
        %v1388 = vmul.f32 %v1360, 1.442695
        %v1389 = vpow.pop %v1388
        %v1390 = vmul.f32 %v1361, 1.442695
        %v1391 = vpow.pop %v1390
        %v1392 = vmul.f32 %v1362, 1.442695
        %v1393 = vpow.pop %v1392
        %v1394 = vmul.f32 %v1363, 1.442695
        %v1395 = vpow.pop %v1394
        %v1396 = vrot.slane %v1365, 4
        %v1397 = vadd.f32 %v1365, %v1396
        %v1398 = vrot.slane %v1397, 2
        %v1399 = vadd.f32 %v1397, %v1398
        %v1400 = vrot.slane %v1399, 1
        %v1401 = vadd.f32 %v1399, %v1400
        %v1402 = vrot.slane %v1367, 4
        %v1403 = vadd.f32 %v1367, %v1402
        %v1404 = vrot.slane %v1403, 2
        %v1405 = vadd.f32 %v1403, %v1404
        %v1406 = vrot.slane %v1405, 1
        %v1407 = vadd.f32 %v1405, %v1406
        %v1408 = vrot.slane %v1369, 4
        %v1409 = vadd.f32 %v1369, %v1408
        %v1410 = vrot.slane %v1409, 2
        %v1411 = vadd.f32 %v1409, %v1410
        %v1412 = vrot.slane %v1411, 1
        %v1413 = vadd.f32 %v1411, %v1412
        %v1414 = vrot.slane %v1371, 4
        %v1415 = vadd.f32 %v1371, %v1414
        %v1416 = vrot.slane %v1415, 2
        %v1417 = vadd.f32 %v1415, %v1416
        %v1418 = vrot.slane %v1417, 1
        %v1419 = vadd.f32 %v1417, %v1418
        %v1420 = vrot.slane %v1373, 4
        %v1421 = vadd.f32 %v1373, %v1420
        %v1422 = vrot.slane %v1421, 2
        %v1423 = vadd.f32 %v1421, %v1422
        %v1424 = vrot.slane %v1423, 1
        %v1425 = vadd.f32 %v1423, %v1424
        %v1426 = vrot.slane %v1375, 4
        %v1427 = vadd.f32 %v1375, %v1426
        %v1428 = vrot.slane %v1427, 2
        %v1429 = vadd.f32 %v1427, %v1428
        %v1430 = vrot.slane %v1429, 1
        %v1431 = vadd.f32 %v1429, %v1430
        %v1432 = vrot.slane %v1377, 4
        %v1433 = vadd.f32 %v1377, %v1432
        %v1434 = vrot.slane %v1433, 2
        %v1435 = vadd.f32 %v1433, %v1434
        %v1436 = vrot.slane %v1435, 1
        %v1437 = vadd.f32 %v1435, %v1436
        %v1438 = vrot.slane %v1379, 4
        %v1439 = vadd.f32 %v1379, %v1438
        %v1440 = vrot.slane %v1439, 2
        %v1441 = vadd.f32 %v1439, %v1440
        %v1442 = vrot.slane %v1441, 1
        %v1443 = vadd.f32 %v1441, %v1442
        %v1444 = vrot.slane %v1381, 4
        %v1445 = vadd.f32 %v1381, %v1444
        %v1446 = vrot.slane %v1445, 2
        %v1447 = vadd.f32 %v1445, %v1446
        %v1448 = vrot.slane %v1447, 1
        %v1449 = vadd.f32 %v1447, %v1448
        %v1450 = vrot.slane %v1383, 4
        %v1451 = vadd.f32 %v1383, %v1450
        %v1452 = vrot.slane %v1451, 2
        %v1453 = vadd.f32 %v1451, %v1452
        %v1454 = vrot.slane %v1453, 1
        %v1455 = vadd.f32 %v1453, %v1454
        %v1456 = vrot.slane %v1385, 4
        %v1457 = vadd.f32 %v1385, %v1456
        %v1458 = vrot.slane %v1457, 2
        %v1459 = vadd.f32 %v1457, %v1458
        %v1460 = vrot.slane %v1459, 1
        %v1461 = vadd.f32 %v1459, %v1460
        %v1462 = vrot.slane %v1387, 4
        %v1463 = vadd.f32 %v1387, %v1462
        %v1464 = vrot.slane %v1463, 2
        %v1465 = vadd.f32 %v1463, %v1464
        %v1466 = vrot.slane %v1465, 1
        %v1467 = vadd.f32 %v1465, %v1466
        %v1468 = vrot.slane %v1389, 4
        %v1469 = vadd.f32 %v1389, %v1468
        %v1470 = vrot.slane %v1469, 2
        %v1471 = vadd.f32 %v1469, %v1470
        %v1472 = vrot.slane %v1471, 1
        %v1473 = vadd.f32 %v1471, %v1472
        %v1474 = vrot.slane %v1391, 4
        %v1475 = vadd.f32 %v1391, %v1474
        %v1476 = vrot.slane %v1475, 2
        %v1477 = vadd.f32 %v1475, %v1476
        %v1478 = vrot.slane %v1477, 1
        %v1479 = vadd.f32 %v1477, %v1478
        %v1480 = vrot.slane %v1393, 4
        %v1481 = vadd.f32 %v1393, %v1480
        %v1482 = vrot.slane %v1481, 2
        %v1483 = vadd.f32 %v1481, %v1482
        %v1484 = vrot.slane %v1483, 1
        %v1485 = vadd.f32 %v1483, %v1484
        %v1486 = vrot.slane %v1395, 4
        %v1487 = vadd.f32 %v1395, %v1486
        %v1488 = vrot.slane %v1487, 2
        %v1489 = vadd.f32 %v1487, %v1488
        %v1490 = vrot.slane %v1489, 1
        %v1491 = vadd.f32 %v1489, %v1490
        %v1492 = vrcp.pop %v1401
        %v1493 = vrcp.pop %v1407
        %v1494 = vrcp.pop %v1413
        %v1495 = vrcp.pop %v1419
        %v1496 = vrcp.pop %v1425
        %v1497 = vrcp.pop %v1431
        %v1498 = vrcp.pop %v1437
        %v1499 = vrcp.pop %v1443
        %v1500 = vrcp.pop %v1449
        %v1501 = vrcp.pop %v1455
        %v1502 = vrcp.pop %v1461
        %v1503 = vrcp.pop %v1467
        %v1504 = vrcp.pop %v1473
        %v1505 = vrcp.pop %v1479
        %v1506 = vrcp.pop %v1485
        %v1507 = vrcp.pop %v1491
        %v1508 = vmul.f32 %v1365, %v1492
        %v1509 = vmul.f32 %v1367, %v1493
        %v1510 = vmul.f32 %v1369, %v1494
        %v1511 = vmul.f32 %v1371, %v1495
        %v1512 = vmul.f32 %v1373, %v1496
        %v1513 = vmul.f32 %v1375, %v1497
        %v1514 = vmul.f32 %v1377, %v1498
        %v1515 = vmul.f32 %v1379, %v1499
        %v1516 = vmul.f32 %v1381, %v1500
        %v1517 = vmul.f32 %v1383, %v1501
        %v1518 = vmul.f32 %v1385, %v1502
        %v1519 = vmul.f32 %v1387, %v1503
        %v1520 = vmul.f32 %v1389, %v1504
        %v1521 = vmul.f32 %v1391, %v1505
        %v1522 = vmul.f32 %v1393, %v1506
        %v1523 = vmul.f32 %v1395, %v1507
        %v1524 = vmul.f32 %v801, %v1508
        %v1525 = vmul.f32 %v802, %v1509
        %v1526 = vmul.f32 %v803, %v1510
        %v1527 = vmul.f32 %v804, %v1511
        %v1528 = vmul.f32 %v805, %v1512
        %v1529 = vmul.f32 %v806, %v1513
        %v1530 = vmul.f32 %v807, %v1514
        %v1531 = vmul.f32 %v808, %v1515
        %v1532 = vmul.f32 %v809, %v1516
        %v1533 = vmul.f32 %v810, %v1517
        %v1534 = vmul.f32 %v811, %v1518
        %v1535 = vmul.f32 %v812, %v1519
        %v1536 = vmul.f32 %v813, %v1520
        %v1537 = vmul.f32 %v814, %v1521
        %v1538 = vmul.f32 %v815, %v1522
        %v1539 = vmul.f32 %v816, %v1523
        %v1540 = vsel %vm451, %v1524, 0.0
        %v1541 = vrot.slane %v1540, 4
        %v1542 = vadd.f32 %v1540, %v1541
        %v1543 = vrot.slane %v1542, 2
        %v1544 = vadd.f32 %v1542, %v1543
        %v1545 = vrot.slane %v1544, 1
        %v1546 = vadd.f32 %v1544, %v1545
        %v1547 = vsel %vm451, %v1525, 0.0
        %v1548 = vrot.slane %v1547, 4
        %v1549 = vadd.f32 %v1547, %v1548
        %v1550 = vrot.slane %v1549, 2
        %v1551 = vadd.f32 %v1549, %v1550
        %v1552 = vrot.slane %v1551, 1
        %v1553 = vadd.f32 %v1551, %v1552
        %v1554 = vsel %vm451, %v1526, 0.0
        %v1555 = vrot.slane %v1554, 4
        %v1556 = vadd.f32 %v1554, %v1555
        %v1557 = vrot.slane %v1556, 2
        %v1558 = vadd.f32 %v1556, %v1557
        %v1559 = vrot.slane %v1558, 1
        %v1560 = vadd.f32 %v1558, %v1559
        %v1561 = vsel %vm451, %v1527, 0.0
        %v1562 = vrot.slane %v1561, 4
        %v1563 = vadd.f32 %v1561, %v1562
        %v1564 = vrot.slane %v1563, 2
        %v1565 = vadd.f32 %v1563, %v1564
        %v1566 = vrot.slane %v1565, 1
        %v1567 = vadd.f32 %v1565, %v1566
        %v1568 = vsel %vm451, %v1528, 0.0
        %v1569 = vrot.slane %v1568, 4
        %v1570 = vadd.f32 %v1568, %v1569
        %v1571 = vrot.slane %v1570, 2
        %v1572 = vadd.f32 %v1570, %v1571
        %v1573 = vrot.slane %v1572, 1
        %v1574 = vadd.f32 %v1572, %v1573
        %v1575 = vsel %vm451, %v1529, 0.0
        %v1576 = vrot.slane %v1575, 4
        %v1577 = vadd.f32 %v1575, %v1576
        %v1578 = vrot.slane %v1577, 2
        %v1579 = vadd.f32 %v1577, %v1578
        %v1580 = vrot.slane %v1579, 1
        %v1581 = vadd.f32 %v1579, %v1580
        %v1582 = vsel %vm451, %v1530, 0.0
        %v1583 = vrot.slane %v1582, 4
        %v1584 = vadd.f32 %v1582, %v1583
        %v1585 = vrot.slane %v1584, 2
        %v1586 = vadd.f32 %v1584, %v1585
        %v1587 = vrot.slane %v1586, 1
        %v1588 = vadd.f32 %v1586, %v1587
        %v1589 = vsel %vm451, %v1531, 0.0
        %v1590 = vrot.slane %v1589, 4
        %v1591 = vadd.f32 %v1589, %v1590
        %v1592 = vrot.slane %v1591, 2
        %v1593 = vadd.f32 %v1591, %v1592
        %v1594 = vrot.slane %v1593, 1
        %v1595 = vadd.f32 %v1593, %v1594
        %v1596 = vsel %vm451, %v1532, 0.0
        %v1597 = vrot.slane %v1596, 4
        %v1598 = vadd.f32 %v1596, %v1597
        %v1599 = vrot.slane %v1598, 2
        %v1600 = vadd.f32 %v1598, %v1599
        %v1601 = vrot.slane %v1600, 1
        %v1602 = vadd.f32 %v1600, %v1601
        %v1603 = vsel %vm451, %v1533, 0.0
        %v1604 = vrot.slane %v1603, 4
        %v1605 = vadd.f32 %v1603, %v1604
        %v1606 = vrot.slane %v1605, 2
        %v1607 = vadd.f32 %v1605, %v1606
        %v1608 = vrot.slane %v1607, 1
        %v1609 = vadd.f32 %v1607, %v1608
        %v1610 = vsel %vm451, %v1534, 0.0
        %v1611 = vrot.slane %v1610, 4
        %v1612 = vadd.f32 %v1610, %v1611
        %v1613 = vrot.slane %v1612, 2
        %v1614 = vadd.f32 %v1612, %v1613
        %v1615 = vrot.slane %v1614, 1
        %v1616 = vadd.f32 %v1614, %v1615
        %v1617 = vsel %vm451, %v1535, 0.0
        %v1618 = vrot.slane %v1617, 4
        %v1619 = vadd.f32 %v1617, %v1618
        %v1620 = vrot.slane %v1619, 2
        %v1621 = vadd.f32 %v1619, %v1620
        %v1622 = vrot.slane %v1621, 1
        %v1623 = vadd.f32 %v1621, %v1622
        %v1624 = vsel %vm451, %v1536, 0.0
        %v1625 = vrot.slane %v1624, 4
        %v1626 = vadd.f32 %v1624, %v1625
        %v1627 = vrot.slane %v1626, 2
        %v1628 = vadd.f32 %v1626, %v1627
        %v1629 = vrot.slane %v1628, 1
        %v1630 = vadd.f32 %v1628, %v1629
        %v1631 = vsel %vm451, %v1537, 0.0
        %v1632 = vrot.slane %v1631, 4
        %v1633 = vadd.f32 %v1631, %v1632
        %v1634 = vrot.slane %v1633, 2
        %v1635 = vadd.f32 %v1633, %v1634
        %v1636 = vrot.slane %v1635, 1
        %v1637 = vadd.f32 %v1635, %v1636
        %v1638 = vsel %vm451, %v1538, 0.0
        %v1639 = vrot.slane %v1638, 4
        %v1640 = vadd.f32 %v1638, %v1639
        %v1641 = vrot.slane %v1640, 2
        %v1642 = vadd.f32 %v1640, %v1641
        %v1643 = vrot.slane %v1642, 1
        %v1644 = vadd.f32 %v1642, %v1643
        %v1645 = vsel %vm451, %v1539, 0.0
        %v1646 = vrot.slane %v1645, 4
        %v1647 = vadd.f32 %v1645, %v1646
        %v1648 = vrot.slane %v1647, 2
        %v1649 = vadd.f32 %v1647, %v1648
        %v1650 = vrot.slane %v1649, 1
        %v1651 = vadd.f32 %v1649, %v1650
        %vm1668 = vcmask 1041409
        %v1669 = vsel %vm1668, %v1553, %v1546
        %vm1670 = vcmask 1042434
        %v1671 = vsel %vm1670, %v1560, %v1669
        %vm1672 = vcmask 1043459
        %v1673 = vsel %vm1672, %v1567, %v1671
        %vm1674 = vcmask 1044484
        %v1675 = vsel %vm1674, %v1574, %v1673
        %vm1676 = vcmask 1045509
        %v1677 = vsel %vm1676, %v1581, %v1675
        %vm1678 = vcmask 1046534
        %v1679 = vsel %vm1678, %v1588, %v1677
        %vm1680 = vcmask 1047559
        %v1681 = vsel %vm1680, %v1595, %v1679
        %v1682 = vsel %vm1668, %v1609, %v1602
        %v1683 = vsel %vm1670, %v1616, %v1682
        %v1684 = vsel %vm1672, %v1623, %v1683
        %v1685 = vsel %vm1674, %v1630, %v1684
        %v1686 = vsel %vm1676, %v1637, %v1685
        %v1687 = vsel %vm1678, %v1644, %v1686
        %v1688 = vsel %vm1680, %v1651, %v1687
        %1691 = vst.msk [vmem:[%s277] sm:$0xff] %vm451, %v1681
        %1692 = vst.msk [vmem:[%s277 + $0x8] sm:$0xff] %vm451, %v1688
        %s1693 = sand.u32 %s169, 1
        %s1694 = scalar_lea.sflag [#allocation3], %s1693
        %s1695 = sand.u32 %s169, 1
        %s1696 = smul.addr %s1695, 16
        %s1697 = scalar_lea.vmem [#allocation2], %s1696
        // Predicated region
        $region45: #{tpu_custom_call.1} parent=43 // pred_check
          %p1698 = pneg %p179
        $region46: #{tpu_custom_call.1} parent=43 // pred_check_branch
          %1700 = sbr.rel (%p1698) target = $region48
        $region47: #{tpu_custom_call.1} parent=43 // pred_region
          %s1701 = smul.u32 2, %s20
          %1703 = vsyncadd %s1694, 0
          %s1704 = smul.addr %s1701, 8
          %s1705 = scalar_lea.hbm %s6, %s1704
          %s1706 = sshll.u32 %s1697, 4
          %s1707 = int_to_ptr.vmem [resolvable:$true] %s1706
          %s1708 = sshll.u32 %s1705, 4
          %s1709 = int_to_ptr.hbm [resolvable:$true] %s1708
          %1714 = dma.vmem_to_hbm [thread:$0]  %s1707, 256, %s1709, %s1694, 128, 128, 8
        $region48: #{tpu_custom_call.1} parent=43 // pred_fallthru
          _
      $region44: #{tpu_custom_call.1} parent=5 // pred_fallthru
        _
      %p1715 = scmp.le.s32.totalorder 2, %s15
      // Predicated region
      $region49: #{tpu_custom_call.1} parent=5 // pred_check
        %p1716 = pneg %p1715
      $region50: #{tpu_custom_call.1} parent=5 // pred_check_branch
        %1718 = sbr.rel (%p1716) target = $region52
      $region51: #{tpu_custom_call.1} parent=5 // pred_region
        %s1719 = ssub.s32 %s15, 2
        // Predicated region
        $region53: #{tpu_custom_call.1} parent=51 // pred_check
          %p1720 = pneg %p185
        $region54: #{tpu_custom_call.1} parent=51 // pred_check_branch
          %1722 = sbr.rel (%p1720) target = $region56
        $region55: #{tpu_custom_call.1} parent=51 // pred_region
          %s1723 = sand.u32 %s170, 1
          %s1724 = scalar_lea.sflag [#allocation3], %s1723
          %s1725 = sand.u32 %s170, 1
          %s1726 = smul.addr %s1725, 16
          %s1727 = scalar_lea.vmem [#allocation2], %s1726
          %1729 = dma.done %s1724, 256
        $region56: #{tpu_custom_call.1} parent=51 // pred_fallthru
          _
      $region52: #{tpu_custom_call.1} parent=5 // pred_fallthru
        _
    $region6: #{tpu_custom_call.1} parent=1 // loop_footer
      %s19 = sadd.s32 1, %s15
    $region7: #{tpu_custom_call.1} parent=1 // loop_footer_branch
      %14 = sbr.rel target = $region3
    $region8: #{tpu_custom_call.1} parent=1 // loop_exit
      _
    %1730 = vsyncpa [#allocation3], 1
    %s1731 = scalar_lea.sflag [#allocation3], 1
    %1732 = vsyncpa %s1731, 1

</llo_original>
